<compile_context>
chip_gen: v7x
topology: tpu7x:2x2x1
jax: 0.10.0
libtpu: 0.0.40
codegen_flags: <defaults>
</compile_context>

<pallas_src>
import jax
import jax.numpy as jnp
import numpy as np
from jax.experimental import pallas as pl
from jax.experimental.pallas import tpu as pltpu

N_GATHER = 6          # gather_index default n=6
LN_EPS = 1e-6


def _sigmoid(v):
    # sigmoid(v) == 0.5*tanh(0.5*v) + 0.5 ; tanh executes on the EUP slot.
    return 0.5 * jnp.tanh(0.5 * v) + 0.5


def _encode_block(seq_ref, wf_ref, bf_ref, wb_ref, bb_ref, gamma_ref, beta_ref):
    """Bidirectional-GRU last-position output + LayerNorm for one batch block.

    seq_ref : (N_GATHER, B, D)  gathered inputs, time-major
    wf_ref  : (D+H, 4H)  fused fwd weights  [[Wi_r Wi_z Wi_n 0],[Wh_r Wh_z 0 Wh_n]]
    bf_ref  : (1, 4H)    fused fwd biases   [bir+bhr, biz+bhz, bin, bhn]
    wb_ref  : (D, 4H)    fused bwd input weights [Wi_r Wi_z Wi_n 0]
    bb_ref  : (1, 4H)    fused bwd biases
    returns : (B, 2H) float32 LayerNorm'd encode row per batch element
    """
    n_t, B, D = seq_ref.shape
    H = D
    w_f = wf_ref[...]                       # hoisted: loaded once per block
    b_f = bf_ref[...]

    def cell(g, h_prev):
        r = _sigmoid(g[:, 0:H])
        z = _sigmoid(g[:, H:2 * H])
        n = jnp.tanh(g[:, 2 * H:3 * H] + r * g[:, 3 * H:4 * H])
        return (1.0 - z) * n + z * h_prev

    # ---- forward direction over the N_GATHER gathered steps (one fused matmul/step)
    h = jnp.zeros((B, H), jnp.float32)
    for t in range(n_t):
        xh = jnp.concatenate([seq_ref[t], h], axis=-1).astype(w_f.dtype)
        g = jnp.dot(xh, w_f, preferred_element_type=jnp.float32) + b_f
        h = cell(g, h)
    h_f = h                                                          # (B, H)

    # ---- backward direction: only its output at the last position is consumed, which
    #      is its first step from h0 = 0, so only the input-side matmul survives.
    x_last = seq_ref[n_t - 1].astype(wb_ref.dtype)
    g_b = jnp.dot(x_last, wb_ref[...], preferred_element_type=jnp.float32) + bb_ref[...]
    h_b = cell(g_b, jnp.zeros((B, H), jnp.float32))                  # (B, H)

    # ---- LayerNorm over the 2H feature (torch.std: unbiased N-1, clamp(min=eps)).
    enc = jnp.concatenate([h_f, h_b], axis=-1)                       # (B, 2H)
    two_h = 2.0 * H
    mu = jnp.sum(enc, axis=-1, keepdims=True) / two_h
    var = jnp.sum((enc - mu) ** 2, axis=-1, keepdims=True) / (two_h - 1.0)
    inv = jax.lax.rsqrt(jnp.maximum(var, LN_EPS * LN_EPS))           # EUP rsqrt
    return (enc - mu) * inv * gamma_ref[...] + beta_ref[...]


def _object_rnn_kernel_flat(seq_ref, wf_ref, bf_ref, wb_ref, bb_ref,
                            gamma_ref, beta_ref, rep_ref, pos_ref, out_ref):
    enc = _encode_block(seq_ref, wf_ref, bf_ref, wb_ref, bb_ref, gamma_ref, beta_ref)
    # Broadcast enc over the L positions with an exact 0/1 replication matmul so the
    # (B, L*2D) output store is fully lane-dense (no masked vst.msk).
    tiled = jnp.dot(enc, rep_ref[...], preferred_element_type=jnp.float32)
    out_ref[...] = pos_ref[...] + tiled


def _object_rnn_kernel_3d(seq_ref, wf_ref, bf_ref, wb_ref, bb_ref,
                          gamma_ref, beta_ref, pos_ref, out_ref):
    enc = _encode_block(seq_ref, wf_ref, bf_ref, wb_ref, bb_ref, gamma_ref, beta_ref)
    out_ref[...] = pos_ref[...] + enc[:, None, :]                    # one fused store


def _fuse_gru_weights(w_ih_t, w_hh_t, b_ih, b_hh, D, H, dtype):
    """Build the fused single-matmul GRU cell parameters.

    Returns (w_full (D+H,4H), w_top (D,4H), bias (1,4H)) with column groups
    [r | z | n_input | n_hidden] so that for xh = [x | h]:
        xh @ w_full + bias = [gi_r+gh_r, gi_z+gh_z, gi_n, gh_n]   (PyTorch gate order).
    """
    zi = jnp.zeros((D, H), jnp.float32)
    zh = jnp.zeros((H, H), jnp.float32)
    top = jnp.concatenate([w_ih_t[:, 0:H], w_ih_t[:, H:2 * H], w_ih_t[:, 2 * H:3 * H], zi], axis=1)
    bot = jnp.concatenate([w_hh_t[:, 0:H], w_hh_t[:, H:2 * H], zh, w_hh_t[:, 2 * H:3 * H]], axis=1)
    w_full = jnp.concatenate([top, bot], axis=0)
    bi = b_ih.reshape(3, H)
    bh = b_hh.reshape(3, H)
    b = jnp.concatenate([bi[0] + bh[0], bi[1] + bh[1], bi[2], bh[2]])[None, :]
    return w_full.astype(dtype), top.astype(dtype), b.astype(jnp.float32)


def object_rnn_forward(x, sub_slidx, sub_elidx, params, *, batch_block=256,
                       matmul_dtype=jnp.float32, use_core_parallel=False):
    x = x.astype(jnp.float32)
    bsz, L, D = x.shape
    H = D
    pos_table = params["pos_table"].astype(jnp.float32)
    assert pos_table.shape[0] >= L, "pos_ebd vocabulary must cover |i - s| (need P >= seq_len)"

    # Batch block: whole batch if it fits, otherwise a multiple of 8 (sublane tiling).
    if bsz <= batch_block:
        B = bsz
    else:
        B = max(8, (batch_block // 8) * 8)
    pad = (-bsz) % B
    bszp = bsz + pad

    sidx = sub_slidx.reshape(bsz).astype(jnp.int32)
    eidx = sub_elidx.reshape(bsz).astype(jnp.int32)
    if pad:
        x = jnp.pad(x, ((0, pad), (0, 0), (0, 0)))
        sidx = jnp.pad(sidx, (0, pad))
        eidx = jnp.pad(eidx, (0, pad))

    # ---- gather_index entirely in the wrapper (no in-kernel gather DMAs) ----
    frac = jnp.arange(N_GATHER, dtype=jnp.float32) / float(N_GATHER - 1)
    gidx = jnp.round(frac[None, :] * sidx[:, None].astype(jnp.float32)
                     + (1.0 - frac[None, :]) * eidx[:, None].astype(jnp.float32)
                     ).astype(jnp.int32)                                   # (bszp, 6)
    seq = jnp.take_along_axis(x, gidx[:, :, None], axis=1)                 # (bszp, 6, D)
    seq_tm = jnp.transpose(seq, (1, 0, 2))                                 # (6, bszp, D)

    # ---- position(): pos_table[|i-s|], pos_table[|i-e|], concatenated in the wrapper
    pos_idx = jnp.arange(L, dtype=jnp.int32)[None, :]
    s_pos = pos_table[jnp.abs(pos_idx - sidx[:, None])]
    e_pos = pos_table[jnp.abs(pos_idx - eidx[:, None])]
    pos3 = jnp.concatenate([s_pos, e_pos], axis=-1)                        # (bszp, L, 2D)

    # ---- fused GRU parameters (backward hidden weights never used: h0 = 0) ----
    w_f, _, b_f = _fuse_gru_weights(params["wih_f"], params["whh_f"],
                                    params["bih_f"], params["bhh_f"], D, H, matmul_dtype)
    _, w_b, b_b = _fuse_gru_weights(params["wih_b"], params["whh_b"],
                                    params["bih_b"], params["bhh_b"], D, H, matmul_dtype)
    gamma = params["gamma"].reshape(1, 2 * H).astype(jnp.float32)
    beta = params["beta"].reshape(1, 2 * H).astype(jnp.float32)

    grid = (bszp // B,)
    sem = (pltpu.CORE_PARALLEL,) if use_core_parallel else ("parallel",)
    const = lambda b: (0, 0)

    common_in_specs = [
        pl.BlockSpec((N_GATHER, B, D), lambda b: (0, b, 0)),   # gathered seq (time-major)
        pl.BlockSpec(w_f.shape, const),                        # fused fwd weights
        pl.BlockSpec(b_f.shape, const),
        pl.BlockSpec(w_b.shape, const),                        # fused bwd input weights
        pl.BlockSpec(b_b.shape, const),
        pl.BlockSpec(gamma.shape, const),
        pl.BlockSpec(beta.shape, const),
    ]

    # Lane-dense output path when 2D < 128 (otherwise the 3D store is already dense).
    flatten = (2 * D) % 128 != 0 and (2 * D) * (L * 2 * D) * 4 <= (4 << 20)

    if flatten:
        rep = jnp.tile(jnp.eye(2 * D, dtype=jnp.float32), (1, L))          # (2D, L*2D)
        pos2 = pos3.reshape(bszp, L * 2 * D)
        out = pl.pallas_call(
            _object_rnn_kernel_flat,
            out_shape=jax.ShapeDtypeStruct((bszp, L * 2 * D), jnp.float32),
            grid=grid,
            in_specs=common_in_specs + [
                pl.BlockSpec(rep.shape, const),
                pl.BlockSpec((B, L * 2 * D), lambda b: (b, 0)),
            ],
            out_specs=pl.BlockSpec((B, L * 2 * D), lambda b: (b, 0)),
            compiler_params=pltpu.CompilerParams(dimension_semantics=sem),
        )(seq_tm, w_f, b_f, w_b, b_b, gamma, beta, rep, pos2)
        out = out.reshape(bszp, L, 2 * D)
    else:
        out = pl.pallas_call(
            _object_rnn_kernel_3d,
            out_shape=jax.ShapeDtypeStruct((bszp, L, 2 * D), jnp.float32),
            grid=grid,
            in_specs=common_in_specs + [
                pl.BlockSpec((B, L, 2 * D), lambda b: (b, 0, 0)),
            ],
            out_specs=pl.BlockSpec((B, L, 2 * D), lambda b: (b, 0, 0)),
            compiler_params=pltpu.CompilerParams(dimension_semantics=sem),
        )(seq_tm, w_f, b_f, w_b, b_b, gamma, beta, pos3)

    return out[:bsz]


# ---------- pure-JAX reference (same semantics as the PyTorch module) ----------
def object_rnn_reference(x, sub_slidx, sub_elidx, params):
    bsz, L, D = x.shape
    H = D
    frac = jnp.arange(N_GATHER, dtype=jnp.float32) / float(N_GATHER - 1)
    s = sub_slidx.astype(jnp.float32)
    e = sub_elidx.astype(jnp.float32)
    idx = jnp.round(frac[None, :] * s + (1.0 - frac[None, :]) * e).astype(jnp.int32)
    seq = jax.vmap(lambda xx, ii: xx[ii])(x, idx)                          # (bsz, 6, D)

    def cell(x_t, h, w_ih, w_hh, b_ih, b_hh):
        gi = x_t @ w_ih + b_ih
        gh = h @ w_hh + b_hh
        r = jax.nn.sigmoid(gi[:, :H] + gh[:, :H])
        z = jax.nn.sigmoid(gi[:, H:2 * H] + gh[:, H:2 * H])
        n = jnp.tanh(gi[:, 2 * H:] + r * gh[:, 2 * H:])
        return (1.0 - z) * n + z * h

    h_f = jnp.zeros((bsz, H), jnp.float32)
    for t in range(N_GATHER):
        h_f = cell(seq[:, t], h_f, params["wih_f"], params["whh_f"],
                   params["bih_f"], params["bhh_f"])
    h_b = cell(seq[:, N_GATHER - 1], jnp.zeros((bsz, H), jnp.float32),
               params["wih_b"], params["whh_b"], params["bih_b"], params["bhh_b"])
    enc = jnp.concatenate([h_f, h_b], axis=-1)
    mu = enc.mean(-1, keepdims=True)
    sigma = jnp.maximum(jnp.sqrt(((enc - mu) ** 2).sum(-1, keepdims=True) / (2 * H - 1)), 1e-6)
    enc = (enc - mu) / sigma * params["gamma"] + params["beta"]

    pos_idx = jnp.arange(L)[None, :]
    s_pos = params["pos_table"][jnp.abs(pos_idx - sub_slidx.astype(jnp.int32))]
    e_pos = params["pos_table"][jnp.abs(pos_idx - sub_elidx.astype(jnp.int32))]
    pos = jnp.concatenate([s_pos, e_pos], axis=-1)
    return enc[:, None, :] + pos


def init_params(key, d_model, pos_vocab):
    H = d_model
    k = 1.0 / np.sqrt(H)
    keys = jax.random.split(key, 9)
    u = lambda kk, shape: jax.random.uniform(kk, shape, jnp.float32, -k, k)
    wih_f = u(keys[0], (3 * H, d_model))   # PyTorch GRU layout (3H, in); stored transposed
    whh_f = u(keys[1], (3 * H, H))
    bih_f = u(keys[2], (3 * H,))
    bhh_f = u(keys[3], (3 * H,))
    wih_b = u(keys[4], (3 * H, d_model))
    whh_b = u(keys[5], (3 * H, H))
    bih_b = u(keys[6], (3 * H,))
    bhh_b = u(keys[7], (3 * H,))
    pos_table = jax.random.normal(keys[8], (pos_vocab, d_model), jnp.float32)
    return {
        "wih_f": wih_f.T, "whh_f": whh_f.T,
        "bih_f": bih_f[None, :], "bhh_f": bhh_f[None, :],
        "wih_b": wih_b.T, "whh_b": whh_b.T,
        "bih_b": bih_b[None, :], "bhh_b": bhh_b[None, :],
        "gamma": jnp.ones((1, 2 * H), jnp.float32),
        "beta": jnp.zeros((1, 2 * H), jnp.float32),
        "pos_table": pos_table,
    }


if __name__ == "__main__":
    key = jax.random.PRNGKey(0)
    bsz, L, D = 2, 8, 32           # batch, seq_len, d_model
    k1, k2, k3, k4 = jax.random.split(key, 4)
    x = jax.random.normal(k1, (bsz, L, D), jnp.float32)
    sub_slidx = jax.random.randint(k2, (bsz, 1), 0, L)
    sub_elidx = jax.random.randint(k3, (bsz, 1), 0, L)
    params = init_params(k4, D, L)

    out = object_rnn_forward(x, sub_slidx, sub_elidx, params)
    out = jax.block_until_ready(out)

    ref = object_rnn_reference(x, sub_slidx, sub_elidx, params)
    np.testing.assert_allclose(np.asarray(out), np.asarray(ref), rtol=1e-3, atol=1e-3)
    print("KERNEL_OK")
</pallas_src>

<mosaic_0001>
module attributes {stable_mosaic.version = 11 : i64} {
  func.func @_object_rnn_kernel_flat(%arg0: i32, %arg1: memref<6x2x32xf32, #tpu.memory_space<vmem>>, %arg2: memref<64x128xf32, #tpu.memory_space<vmem>>, %arg3: memref<1x128xf32, #tpu.memory_space<vmem>>, %arg4: memref<32x128xf32, #tpu.memory_space<vmem>>, %arg5: memref<1x128xf32, #tpu.memory_space<vmem>>, %arg6: memref<1x64xf32, #tpu.memory_space<vmem>>, %arg7: memref<1x64xf32, #tpu.memory_space<vmem>>, %arg8: memref<64x512xf32, #tpu.memory_space<vmem>>, %arg9: memref<2x512xf32, #tpu.memory_space<vmem>>, %arg10: memref<2x512xf32, #tpu.memory_space<vmem>>) attributes {dimension_semantics = [#tpu.dimension_semantics<parallel>], iteration_bounds = array<i64: 1>, scalar_prefetch = 0 : i64, scratch_operands = 0 : i64, tpu.core_type = #tpu.core_type<tc>, window_params = [{transform_indices = @transform_0, window_bounds = array<i64: 6, 2, 32>}, {pipeline_mode = #tpu.pipeline_mode<synchronous>, transform_indices = @transform_1, window_bounds = array<i64: 64, 128>}, {pipeline_mode = #tpu.pipeline_mode<synchronous>, transform_indices = @transform_2, window_bounds = array<i64: 1, 128>}, {pipeline_mode = #tpu.pipeline_mode<synchronous>, transform_indices = @transform_3, window_bounds = array<i64: 32, 128>}, {pipeline_mode = #tpu.pipeline_mode<synchronous>, transform_indices = @transform_4, window_bounds = array<i64: 1, 128>}, {pipeline_mode = #tpu.pipeline_mode<synchronous>, transform_indices = @transform_5, window_bounds = array<i64: 1, 64>}, {pipeline_mode = #tpu.pipeline_mode<synchronous>, transform_indices = @transform_6, window_bounds = array<i64: 1, 64>}, {pipeline_mode = #tpu.pipeline_mode<synchronous>, transform_indices = @transform_7, window_bounds = array<i64: 64, 512>}, {transform_indices = @transform_8, window_bounds = array<i64: 2, 512>}, {transform_indices = @transform_9, window_bounds = array<i64: 2, 512>}]} {
    %c0 = arith.constant 0 : index
    %c0_0 = arith.constant 0 : index
    %0 = vector.load %arg2[%c0, %c0_0] : memref<64x128xf32, #tpu.memory_space<vmem>>, vector<64x128xf32>
    %c0_1 = arith.constant 0 : index
    %c0_2 = arith.constant 0 : index
    %1 = vector.load %arg3[%c0_1, %c0_2] : memref<1x128xf32, #tpu.memory_space<vmem>>, vector<1x128xf32>
    %cst = arith.constant 0.000000e+00 : f32
    %2 = vector.broadcast %cst : f32 to vector<2x32xf32>
    %c0_3 = arith.constant 0 : index
    %c0_4 = arith.constant 0 : index
    %c0_5 = arith.constant 0 : index
    %3 = vector.load %arg1[%c0_3, %c0_4, %c0_5] : memref<6x2x32xf32, #tpu.memory_space<vmem>>, vector<1x2x32xf32>
    %4 = vector.shape_cast %3 : vector<1x2x32xf32> to vector<2x32xf32>
    %5 = tpu.concatenate %4, %2 in 1 : vector<2x32xf32>, vector<2x32xf32> -> vector<2x64xf32>
    %cst_6 = arith.constant dense<0.000000e+00> : vector<2x128xf32>
    %6 = tpu.matmul %5, %0, %cst_6 {dimension_numbers = #tpu.dot_dimension_numbers<[1], [0], [0], [1], [0, 0, 1, 1], [], []>} : vector<2x64xf32>, vector<64x128xf32>, vector<2x128xf32> -> vector<2x128xf32>
    %7 = vector.broadcast %1 : vector<1x128xf32> to vector<2x128xf32>
    %8 = arith.addf %6, %7 : vector<2x128xf32>
    %9 = vector.extract_strided_slice %8 {offsets = [0, 0], sizes = [2, 32], strides = [1, 1]} : vector<2x128xf32> to vector<2x32xf32>
    %cst_7 = arith.constant 5.000000e-01 : f32
    %10 = vector.broadcast %cst_7 : f32 to vector<2x32xf32>
    %11 = arith.mulf %10, %9 : vector<2x32xf32>
    %12 = math.tanh %11 : vector<2x32xf32>
    %cst_8 = arith.constant 5.000000e-01 : f32
    %13 = vector.broadcast %cst_8 : f32 to vector<2x32xf32>
    %14 = arith.mulf %13, %12 : vector<2x32xf32>
    %cst_9 = arith.constant 5.000000e-01 : f32
    %15 = vector.broadcast %cst_9 : f32 to vector<2x32xf32>
    %16 = arith.addf %14, %15 : vector<2x32xf32>
    %17 = vector.extract_strided_slice %8 {offsets = [0, 32], sizes = [2, 32], strides = [1, 1]} : vector<2x128xf32> to vector<2x32xf32>
    %cst_10 = arith.constant 5.000000e-01 : f32
    %18 = vector.broadcast %cst_10 : f32 to vector<2x32xf32>
    %19 = arith.mulf %18, %17 : vector<2x32xf32>
    %20 = math.tanh %19 : vector<2x32xf32>
    %cst_11 = arith.constant 5.000000e-01 : f32
    %21 = vector.broadcast %cst_11 : f32 to vector<2x32xf32>
    %22 = arith.mulf %21, %20 : vector<2x32xf32>
    %cst_12 = arith.constant 5.000000e-01 : f32
    %23 = vector.broadcast %cst_12 : f32 to vector<2x32xf32>
    %24 = arith.addf %22, %23 : vector<2x32xf32>
    %25 = vector.extract_strided_slice %8 {offsets = [0, 64], sizes = [2, 32], strides = [1, 1]} : vector<2x128xf32> to vector<2x32xf32>
    %26 = vector.extract_strided_slice %8 {offsets = [0, 96], sizes = [2, 32], strides = [1, 1]} : vector<2x128xf32> to vector<2x32xf32>
    %27 = arith.mulf %16, %26 : vector<2x32xf32>
    %28 = arith.addf %25, %27 : vector<2x32xf32>
    %29 = math.tanh %28 : vector<2x32xf32>
    %cst_13 = arith.constant 1.000000e+00 : f32
    %30 = vector.broadcast %cst_13 : f32 to vector<2x32xf32>
    %31 = arith.subf %30, %24 : vector<2x32xf32>
    %32 = arith.mulf %31, %29 : vector<2x32xf32>
    %33 = arith.mulf %24, %2 : vector<2x32xf32>
    %34 = arith.addf %32, %33 : vector<2x32xf32>
    %c1 = arith.constant 1 : index
    %c0_14 = arith.constant 0 : index
    %c0_15 = arith.constant 0 : index
    %35 = vector.load %arg1[%c1, %c0_14, %c0_15] : memref<6x2x32xf32, #tpu.memory_space<vmem>>, vector<1x2x32xf32>
    %36 = vector.shape_cast %35 : vector<1x2x32xf32> to vector<2x32xf32>
    %37 = tpu.concatenate %36, %34 in 1 : vector<2x32xf32>, vector<2x32xf32> -> vector<2x64xf32>
    %cst_16 = arith.constant dense<0.000000e+00> : vector<2x128xf32>
    %38 = tpu.matmul %37, %0, %cst_16 {dimension_numbers = #tpu.dot_dimension_numbers<[1], [0], [0], [1], [0, 0, 1, 1], [], []>} : vector<2x64xf32>, vector<64x128xf32>, vector<2x128xf32> -> vector<2x128xf32>
    %39 = vector.broadcast %1 : vector<1x128xf32> to vector<2x128xf32>
    %40 = arith.addf %38, %39 : vector<2x128xf32>
    %41 = vector.extract_strided_slice %40 {offsets = [0, 0], sizes = [2, 32], strides = [1, 1]} : vector<2x128xf32> to vector<2x32xf32>
    %cst_17 = arith.constant 5.000000e-01 : f32
    %42 = vector.broadcast %cst_17 : f32 to vector<2x32xf32>
    %43 = arith.mulf %42, %41 : vector<2x32xf32>
    %44 = math.tanh %43 : vector<2x32xf32>
    %cst_18 = arith.constant 5.000000e-01 : f32
    %45 = vector.broadcast %cst_18 : f32 to vector<2x32xf32>
    %46 = arith.mulf %45, %44 : vector<2x32xf32>
    %cst_19 = arith.constant 5.000000e-01 : f32
    %47 = vector.broadcast %cst_19 : f32 to vector<2x32xf32>
    %48 = arith.addf %46, %47 : vector<2x32xf32>
    %49 = vector.extract_strided_slice %40 {offsets = [0, 32], sizes = [2, 32], strides = [1, 1]} : vector<2x128xf32> to vector<2x32xf32>
    %cst_20 = arith.constant 5.000000e-01 : f32
    %50 = vector.broadcast %cst_20 : f32 to vector<2x32xf32>
    %51 = arith.mulf %50, %49 : vector<2x32xf32>
    %52 = math.tanh %51 : vector<2x32xf32>
    %cst_21 = arith.constant 5.000000e-01 : f32
    %53 = vector.broadcast %cst_21 : f32 to vector<2x32xf32>
    %54 = arith.mulf %53, %52 : vector<2x32xf32>
    %cst_22 = arith.constant 5.000000e-01 : f32
    %55 = vector.broadcast %cst_22 : f32 to vector<2x32xf32>
    %56 = arith.addf %54, %55 : vector<2x32xf32>
    %57 = vector.extract_strided_slice %40 {offsets = [0, 64], sizes = [2, 32], strides = [1, 1]} : vector<2x128xf32> to vector<2x32xf32>
    %58 = vector.extract_strided_slice %40 {offsets = [0, 96], sizes = [2, 32], strides = [1, 1]} : vector<2x128xf32> to vector<2x32xf32>
    %59 = arith.mulf %48, %58 : vector<2x32xf32>
    %60 = arith.addf %57, %59 : vector<2x32xf32>
    %61 = math.tanh %60 : vector<2x32xf32>
    %cst_23 = arith.constant 1.000000e+00 : f32
    %62 = vector.broadcast %cst_23 : f32 to vector<2x32xf32>
    %63 = arith.subf %62, %56 : vector<2x32xf32>
    %64 = arith.mulf %63, %61 : vector<2x32xf32>
    %65 = arith.mulf %56, %34 : vector<2x32xf32>
    %66 = arith.addf %64, %65 : vector<2x32xf32>
    %c2 = arith.constant 2 : index
    %c0_24 = arith.constant 0 : index
    %c0_25 = arith.constant 0 : index
    %67 = vector.load %arg1[%c2, %c0_24, %c0_25] : memref<6x2x32xf32, #tpu.memory_space<vmem>>, vector<1x2x32xf32>
    %68 = vector.shape_cast %67 : vector<1x2x32xf32> to vector<2x32xf32>
    %69 = tpu.concatenate %68, %66 in 1 : vector<2x32xf32>, vector<2x32xf32> -> vector<2x64xf32>
    %cst_26 = arith.constant dense<0.000000e+00> : vector<2x128xf32>
    %70 = tpu.matmul %69, %0, %cst_26 {dimension_numbers = #tpu.dot_dimension_numbers<[1], [0], [0], [1], [0, 0, 1, 1], [], []>} : vector<2x64xf32>, vector<64x128xf32>, vector<2x128xf32> -> vector<2x128xf32>
    %71 = vector.broadcast %1 : vector<1x128xf32> to vector<2x128xf32>
    %72 = arith.addf %70, %71 : vector<2x128xf32>
    %73 = vector.extract_strided_slice %72 {offsets = [0, 0], sizes = [2, 32], strides = [1, 1]} : vector<2x128xf32> to vector<2x32xf32>
    %cst_27 = arith.constant 5.000000e-01 : f32
    %74 = vector.broadcast %cst_27 : f32 to vector<2x32xf32>
    %75 = arith.mulf %74, %73 : vector<2x32xf32>
    %76 = math.tanh %75 : vector<2x32xf32>
    %cst_28 = arith.constant 5.000000e-01 : f32
    %77 = vector.broadcast %cst_28 : f32 to vector<2x32xf32>
    %78 = arith.mulf %77, %76 : vector<2x32xf32>
    %cst_29 = arith.constant 5.000000e-01 : f32
    %79 = vector.broadcast %cst_29 : f32 to vector<2x32xf32>
    %80 = arith.addf %78, %79 : vector<2x32xf32>
    %81 = vector.extract_strided_slice %72 {offsets = [0, 32], sizes = [2, 32], strides = [1, 1]} : vector<2x128xf32> to vector<2x32xf32>
    %cst_30 = arith.constant 5.000000e-01 : f32
    %82 = vector.broadcast %cst_30 : f32 to vector<2x32xf32>
    %83 = arith.mulf %82, %81 : vector<2x32xf32>
    %84 = math.tanh %83 : vector<2x32xf32>
    %cst_31 = arith.constant 5.000000e-01 : f32
    %85 = vector.broadcast %cst_31 : f32 to vector<2x32xf32>
    %86 = arith.mulf %85, %84 : vector<2x32xf32>
    %cst_32 = arith.constant 5.000000e-01 : f32
    %87 = vector.broadcast %cst_32 : f32 to vector<2x32xf32>
    %88 = arith.addf %86, %87 : vector<2x32xf32>
    %89 = vector.extract_strided_slice %72 {offsets = [0, 64], sizes = [2, 32], strides = [1, 1]} : vector<2x128xf32> to vector<2x32xf32>
    %90 = vector.extract_strided_slice %72 {offsets = [0, 96], sizes = [2, 32], strides = [1, 1]} : vector<2x128xf32> to vector<2x32xf32>
    %91 = arith.mulf %80, %90 : vector<2x32xf32>
    %92 = arith.addf %89, %91 : vector<2x32xf32>
    %93 = math.tanh %92 : vector<2x32xf32>
    %cst_33 = arith.constant 1.000000e+00 : f32
    %94 = vector.broadcast %cst_33 : f32 to vector<2x32xf32>
    %95 = arith.subf %94, %88 : vector<2x32xf32>
    %96 = arith.mulf %95, %93 : vector<2x32xf32>
    %97 = arith.mulf %88, %66 : vector<2x32xf32>
    %98 = arith.addf %96, %97 : vector<2x32xf32>
    %c3 = arith.constant 3 : index
    %c0_34 = arith.constant 0 : index
    %c0_35 = arith.constant 0 : index
    %99 = vector.load %arg1[%c3, %c0_34, %c0_35] : memref<6x2x32xf32, #tpu.memory_space<vmem>>, vector<1x2x32xf32>
    %100 = vector.shape_cast %99 : vector<1x2x32xf32> to vector<2x32xf32>
    %101 = tpu.concatenate %100, %98 in 1 : vector<2x32xf32>, vector<2x32xf32> -> vector<2x64xf32>
    %cst_36 = arith.constant dense<0.000000e+00> : vector<2x128xf32>
    %102 = tpu.matmul %101, %0, %cst_36 {dimension_numbers = #tpu.dot_dimension_numbers<[1], [0], [0], [1], [0, 0, 1, 1], [], []>} : vector<2x64xf32>, vector<64x128xf32>, vector<2x128xf32> -> vector<2x128xf32>
    %103 = vector.broadcast %1 : vector<1x128xf32> to vector<2x128xf32>
    %104 = arith.addf %102, %103 : vector<2x128xf32>
    %105 = vector.extract_strided_slice %104 {offsets = [0, 0], sizes = [2, 32], strides = [1, 1]} : vector<2x128xf32> to vector<2x32xf32>
    %cst_37 = arith.constant 5.000000e-01 : f32
    %106 = vector.broadcast %cst_37 : f32 to vector<2x32xf32>
    %107 = arith.mulf %106, %105 : vector<2x32xf32>
    %108 = math.tanh %107 : vector<2x32xf32>
    %cst_38 = arith.constant 5.000000e-01 : f32
    %109 = vector.broadcast %cst_38 : f32 to vector<2x32xf32>
    %110 = arith.mulf %109, %108 : vector<2x32xf32>
    %cst_39 = arith.constant 5.000000e-01 : f32
    %111 = vector.broadcast %cst_39 : f32 to vector<2x32xf32>
    %112 = arith.addf %110, %111 : vector<2x32xf32>
    %113 = vector.extract_strided_slice %104 {offsets = [0, 32], sizes = [2, 32], strides = [1, 1]} : vector<2x128xf32> to vector<2x32xf32>
    %cst_40 = arith.constant 5.000000e-01 : f32
    %114 = vector.broadcast %cst_40 : f32 to vector<2x32xf32>
    %115 = arith.mulf %114, %113 : vector<2x32xf32>
    %116 = math.tanh %115 : vector<2x32xf32>
    %cst_41 = arith.constant 5.000000e-01 : f32
    %117 = vector.broadcast %cst_41 : f32 to vector<2x32xf32>
    %118 = arith.mulf %117, %116 : vector<2x32xf32>
    %cst_42 = arith.constant 5.000000e-01 : f32
    %119 = vector.broadcast %cst_42 : f32 to vector<2x32xf32>
    %120 = arith.addf %118, %119 : vector<2x32xf32>
    %121 = vector.extract_strided_slice %104 {offsets = [0, 64], sizes = [2, 32], strides = [1, 1]} : vector<2x128xf32> to vector<2x32xf32>
    %122 = vector.extract_strided_slice %104 {offsets = [0, 96], sizes = [2, 32], strides = [1, 1]} : vector<2x128xf32> to vector<2x32xf32>
    %123 = arith.mulf %112, %122 : vector<2x32xf32>
    %124 = arith.addf %121, %123 : vector<2x32xf32>
    %125 = math.tanh %124 : vector<2x32xf32>
    %cst_43 = arith.constant 1.000000e+00 : f32
    %126 = vector.broadcast %cst_43 : f32 to vector<2x32xf32>
    %127 = arith.subf %126, %120 : vector<2x32xf32>
    %128 = arith.mulf %127, %125 : vector<2x32xf32>
    %129 = arith.mulf %120, %98 : vector<2x32xf32>
    %130 = arith.addf %128, %129 : vector<2x32xf32>
    %c4 = arith.constant 4 : index
    %c0_44 = arith.constant 0 : index
    %c0_45 = arith.constant 0 : index
    %131 = vector.load %arg1[%c4, %c0_44, %c0_45] : memref<6x2x32xf32, #tpu.memory_space<vmem>>, vector<1x2x32xf32>
    %132 = vector.shape_cast %131 : vector<1x2x32xf32> to vector<2x32xf32>
    %133 = tpu.concatenate %132, %130 in 1 : vector<2x32xf32>, vector<2x32xf32> -> vector<2x64xf32>
    %cst_46 = arith.constant dense<0.000000e+00> : vector<2x128xf32>
    %134 = tpu.matmul %133, %0, %cst_46 {dimension_numbers = #tpu.dot_dimension_numbers<[1], [0], [0], [1], [0, 0, 1, 1], [], []>} : vector<2x64xf32>, vector<64x128xf32>, vector<2x128xf32> -> vector<2x128xf32>
    %135 = vector.broadcast %1 : vector<1x128xf32> to vector<2x128xf32>
    %136 = arith.addf %134, %135 : vector<2x128xf32>
    %137 = vector.extract_strided_slice %136 {offsets = [0, 0], sizes = [2, 32], strides = [1, 1]} : vector<2x128xf32> to vector<2x32xf32>
    %cst_47 = arith.constant 5.000000e-01 : f32
    %138 = vector.broadcast %cst_47 : f32 to vector<2x32xf32>
    %139 = arith.mulf %138, %137 : vector<2x32xf32>
    %140 = math.tanh %139 : vector<2x32xf32>
    %cst_48 = arith.constant 5.000000e-01 : f32
    %141 = vector.broadcast %cst_48 : f32 to vector<2x32xf32>
    %142 = arith.mulf %141, %140 : vector<2x32xf32>
    %cst_49 = arith.constant 5.000000e-01 : f32
    %143 = vector.broadcast %cst_49 : f32 to vector<2x32xf32>
    %144 = arith.addf %142, %143 : vector<2x32xf32>
    %145 = vector.extract_strided_slice %136 {offsets = [0, 32], sizes = [2, 32], strides = [1, 1]} : vector<2x128xf32> to vector<2x32xf32>
    %cst_50 = arith.constant 5.000000e-01 : f32
    %146 = vector.broadcast %cst_50 : f32 to vector<2x32xf32>
    %147 = arith.mulf %146, %145 : vector<2x32xf32>
    %148 = math.tanh %147 : vector<2x32xf32>
    %cst_51 = arith.constant 5.000000e-01 : f32
    %149 = vector.broadcast %cst_51 : f32 to vector<2x32xf32>
    %150 = arith.mulf %149, %148 : vector<2x32xf32>
    %cst_52 = arith.constant 5.000000e-01 : f32
    %151 = vector.broadcast %cst_52 : f32 to vector<2x32xf32>
    %152 = arith.addf %150, %151 : vector<2x32xf32>
    %153 = vector.extract_strided_slice %136 {offsets = [0, 64], sizes = [2, 32], strides = [1, 1]} : vector<2x128xf32> to vector<2x32xf32>
    %154 = vector.extract_strided_slice %136 {offsets = [0, 96], sizes = [2, 32], strides = [1, 1]} : vector<2x128xf32> to vector<2x32xf32>
    %155 = arith.mulf %144, %154 : vector<2x32xf32>
    %156 = arith.addf %153, %155 : vector<2x32xf32>
    %157 = math.tanh %156 : vector<2x32xf32>
    %cst_53 = arith.constant 1.000000e+00 : f32
    %158 = vector.broadcast %cst_53 : f32 to vector<2x32xf32>
    %159 = arith.subf %158, %152 : vector<2x32xf32>
    %160 = arith.mulf %159, %157 : vector<2x32xf32>
    %161 = arith.mulf %152, %130 : vector<2x32xf32>
    %162 = arith.addf %160, %161 : vector<2x32xf32>
    %c5 = arith.constant 5 : index
    %c0_54 = arith.constant 0 : index
    %c0_55 = arith.constant 0 : index
    %163 = vector.load %arg1[%c5, %c0_54, %c0_55] : memref<6x2x32xf32, #tpu.memory_space<vmem>>, vector<1x2x32xf32>
    %164 = vector.shape_cast %163 : vector<1x2x32xf32> to vector<2x32xf32>
    %165 = tpu.concatenate %164, %162 in 1 : vector<2x32xf32>, vector<2x32xf32> -> vector<2x64xf32>
    %cst_56 = arith.constant dense<0.000000e+00> : vector<2x128xf32>
    %166 = tpu.matmul %165, %0, %cst_56 {dimension_numbers = #tpu.dot_dimension_numbers<[1], [0], [0], [1], [0, 0, 1, 1], [], []>} : vector<2x64xf32>, vector<64x128xf32>, vector<2x128xf32> -> vector<2x128xf32>
    %167 = vector.broadcast %1 : vector<1x128xf32> to vector<2x128xf32>
    %168 = arith.addf %166, %167 : vector<2x128xf32>
    %169 = vector.extract_strided_slice %168 {offsets = [0, 0], sizes = [2, 32], strides = [1, 1]} : vector<2x128xf32> to vector<2x32xf32>
    %cst_57 = arith.constant 5.000000e-01 : f32
    %170 = vector.broadcast %cst_57 : f32 to vector<2x32xf32>
    %171 = arith.mulf %170, %169 : vector<2x32xf32>
    %172 = math.tanh %171 : vector<2x32xf32>
    %cst_58 = arith.constant 5.000000e-01 : f32
    %173 = vector.broadcast %cst_58 : f32 to vector<2x32xf32>
    %174 = arith.mulf %173, %172 : vector<2x32xf32>
    %cst_59 = arith.constant 5.000000e-01 : f32
    %175 = vector.broadcast %cst_59 : f32 to vector<2x32xf32>
    %176 = arith.addf %174, %175 : vector<2x32xf32>
    %177 = vector.extract_strided_slice %168 {offsets = [0, 32], sizes = [2, 32], strides = [1, 1]} : vector<2x128xf32> to vector<2x32xf32>
    %cst_60 = arith.constant 5.000000e-01 : f32
    %178 = vector.broadcast %cst_60 : f32 to vector<2x32xf32>
    %179 = arith.mulf %178, %177 : vector<2x32xf32>
    %180 = math.tanh %179 : vector<2x32xf32>
    %cst_61 = arith.constant 5.000000e-01 : f32
    %181 = vector.broadcast %cst_61 : f32 to vector<2x32xf32>
    %182 = arith.mulf %181, %180 : vector<2x32xf32>
    %cst_62 = arith.constant 5.000000e-01 : f32
    %183 = vector.broadcast %cst_62 : f32 to vector<2x32xf32>
    %184 = arith.addf %182, %183 : vector<2x32xf32>
    %185 = vector.extract_strided_slice %168 {offsets = [0, 64], sizes = [2, 32], strides = [1, 1]} : vector<2x128xf32> to vector<2x32xf32>
    %186 = vector.extract_strided_slice %168 {offsets = [0, 96], sizes = [2, 32], strides = [1, 1]} : vector<2x128xf32> to vector<2x32xf32>
    %187 = arith.mulf %176, %186 : vector<2x32xf32>
    %188 = arith.addf %185, %187 : vector<2x32xf32>
    %189 = math.tanh %188 : vector<2x32xf32>
    %cst_63 = arith.constant 1.000000e+00 : f32
    %190 = vector.broadcast %cst_63 : f32 to vector<2x32xf32>
    %191 = arith.subf %190, %184 : vector<2x32xf32>
    %192 = arith.mulf %191, %189 : vector<2x32xf32>
    %193 = arith.mulf %184, %162 : vector<2x32xf32>
    %194 = arith.addf %192, %193 : vector<2x32xf32>
    %c5_64 = arith.constant 5 : index
    %c0_65 = arith.constant 0 : index
    %c0_66 = arith.constant 0 : index
    %195 = vector.load %arg1[%c5_64, %c0_65, %c0_66] : memref<6x2x32xf32, #tpu.memory_space<vmem>>, vector<1x2x32xf32>
    %196 = vector.shape_cast %195 : vector<1x2x32xf32> to vector<2x32xf32>
    %c0_67 = arith.constant 0 : index
    %c0_68 = arith.constant 0 : index
    %197 = vector.load %arg4[%c0_67, %c0_68] : memref<32x128xf32, #tpu.memory_space<vmem>>, vector<32x128xf32>
    %cst_69 = arith.constant dense<0.000000e+00> : vector<2x128xf32>
    %198 = tpu.matmul %196, %197, %cst_69 {dimension_numbers = #tpu.dot_dimension_numbers<[1], [0], [0], [1], [0, 0, 1, 1], [], []>} : vector<2x32xf32>, vector<32x128xf32>, vector<2x128xf32> -> vector<2x128xf32>
    %c0_70 = arith.constant 0 : index
    %c0_71 = arith.constant 0 : index
    %199 = vector.load %arg5[%c0_70, %c0_71] : memref<1x128xf32, #tpu.memory_space<vmem>>, vector<1x128xf32>
    %200 = vector.broadcast %199 : vector<1x128xf32> to vector<2x128xf32>
    %201 = arith.addf %198, %200 : vector<2x128xf32>
    %cst_72 = arith.constant 0.000000e+00 : f32
    %202 = vector.broadcast %cst_72 : f32 to vector<2x32xf32>
    %203 = vector.extract_strided_slice %201 {offsets = [0, 0], sizes = [2, 32], strides = [1, 1]} : vector<2x128xf32> to vector<2x32xf32>
    %cst_73 = arith.constant 5.000000e-01 : f32
    %204 = vector.broadcast %cst_73 : f32 to vector<2x32xf32>
    %205 = arith.mulf %204, %203 : vector<2x32xf32>
    %206 = math.tanh %205 : vector<2x32xf32>
    %cst_74 = arith.constant 5.000000e-01 : f32
    %207 = vector.broadcast %cst_74 : f32 to vector<2x32xf32>
    %208 = arith.mulf %207, %206 : vector<2x32xf32>
    %cst_75 = arith.constant 5.000000e-01 : f32
    %209 = vector.broadcast %cst_75 : f32 to vector<2x32xf32>
    %210 = arith.addf %208, %209 : vector<2x32xf32>
    %211 = vector.extract_strided_slice %201 {offsets = [0, 32], sizes = [2, 32], strides = [1, 1]} : vector<2x128xf32> to vector<2x32xf32>
    %cst_76 = arith.constant 5.000000e-01 : f32
    %212 = vector.broadcast %cst_76 : f32 to vector<2x32xf32>
    %213 = arith.mulf %212, %211 : vector<2x32xf32>
    %214 = math.tanh %213 : vector<2x32xf32>
    %cst_77 = arith.constant 5.000000e-01 : f32
    %215 = vector.broadcast %cst_77 : f32 to vector<2x32xf32>
    %216 = arith.mulf %215, %214 : vector<2x32xf32>
    %cst_78 = arith.constant 5.000000e-01 : f32
    %217 = vector.broadcast %cst_78 : f32 to vector<2x32xf32>
    %218 = arith.addf %216, %217 : vector<2x32xf32>
    %219 = vector.extract_strided_slice %201 {offsets = [0, 64], sizes = [2, 32], strides = [1, 1]} : vector<2x128xf32> to vector<2x32xf32>
    %220 = vector.extract_strided_slice %201 {offsets = [0, 96], sizes = [2, 32], strides = [1, 1]} : vector<2x128xf32> to vector<2x32xf32>
    %221 = arith.mulf %210, %220 : vector<2x32xf32>
    %222 = arith.addf %219, %221 : vector<2x32xf32>
    %223 = math.tanh %222 : vector<2x32xf32>
    %cst_79 = arith.constant 1.000000e+00 : f32
    %224 = vector.broadcast %cst_79 : f32 to vector<2x32xf32>
    %225 = arith.subf %224, %218 : vector<2x32xf32>
    %226 = arith.mulf %225, %223 : vector<2x32xf32>
    %227 = arith.mulf %218, %202 : vector<2x32xf32>
    %228 = arith.addf %226, %227 : vector<2x32xf32>
    %229 = tpu.concatenate %194, %228 in 1 : vector<2x32xf32>, vector<2x32xf32> -> vector<2x64xf32>
    %cst_80 = arith.constant dense<0.000000e+00> : vector<2xf32>
    %230 = vector.multi_reduction <add>, %229, %cst_80 [1] : vector<2x64xf32> to vector<2xf32>
    %231 = vector.shape_cast %230 : vector<2xf32> to vector<2x1xf32>
    %cst_81 = arith.constant 6.400000e+01 : f32
    %232 = vector.broadcast %cst_81 : f32 to vector<2x1xf32>
    %233 = arith.divf %231, %232 : vector<2x1xf32>
    %234 = vector.broadcast %233 : vector<2x1xf32> to vector<2x64xf32>
    %235 = arith.subf %229, %234 : vector<2x64xf32>
    %236 = arith.mulf %235, %235 : vector<2x64xf32>
    %cst_82 = arith.constant dense<0.000000e+00> : vector<2xf32>
    %237 = vector.multi_reduction <add>, %236, %cst_82 [1] : vector<2x64xf32> to vector<2xf32>
    %238 = vector.shape_cast %237 : vector<2xf32> to vector<2x1xf32>
    %cst_83 = arith.constant 6.300000e+01 : f32
    %239 = vector.broadcast %cst_83 : f32 to vector<2x1xf32>
    %240 = arith.divf %238, %239 : vector<2x1xf32>
    %cst_84 = arith.constant 9.99999996E-13 : f32
    %241 = vector.broadcast %cst_84 : f32 to vector<2x1xf32>
    %242 = arith.maximumf %240, %241 : vector<2x1xf32>
    %243 = math.rsqrt %242 : vector<2x1xf32>
    %244 = vector.broadcast %233 : vector<2x1xf32> to vector<2x64xf32>
    %245 = arith.subf %229, %244 : vector<2x64xf32>
    %246 = vector.broadcast %243 : vector<2x1xf32> to vector<2x64xf32>
    %247 = arith.mulf %245, %246 : vector<2x64xf32>
    %c0_85 = arith.constant 0 : index
    %c0_86 = arith.constant 0 : index
    %248 = vector.load %arg6[%c0_85, %c0_86] : memref<1x64xf32, #tpu.memory_space<vmem>>, vector<1x64xf32>
    %249 = vector.broadcast %248 : vector<1x64xf32> to vector<2x64xf32>
    %250 = arith.mulf %247, %249 : vector<2x64xf32>
    %c0_87 = arith.constant 0 : index
    %c0_88 = arith.constant 0 : index
    %251 = vector.load %arg7[%c0_87, %c0_88] : memref<1x64xf32, #tpu.memory_space<vmem>>, vector<1x64xf32>
    %252 = vector.broadcast %251 : vector<1x64xf32> to vector<2x64xf32>
    %253 = arith.addf %250, %252 : vector<2x64xf32>
    %c0_89 = arith.constant 0 : index
    %c0_90 = arith.constant 0 : index
    %254 = vector.load %arg8[%c0_89, %c0_90] : memref<64x512xf32, #tpu.memory_space<vmem>>, vector<64x512xf32>
    %cst_91 = arith.constant dense<0.000000e+00> : vector<2x512xf32>
    %255 = tpu.matmul %253, %254, %cst_91 {dimension_numbers = #tpu.dot_dimension_numbers<[1], [0], [0], [1], [0, 0, 1, 1], [], []>} : vector<2x64xf32>, vector<64x512xf32>, vector<2x512xf32> -> vector<2x512xf32>
    %c0_92 = arith.constant 0 : index
    %c0_93 = arith.constant 0 : index
    %256 = vector.load %arg9[%c0_92, %c0_93] : memref<2x512xf32, #tpu.memory_space<vmem>>, vector<2x512xf32>
    %257 = arith.addf %256, %255 : vector<2x512xf32>
    %c0_94 = arith.constant 0 : index
    %c0_95 = arith.constant 0 : index
    %258 = vector.load %arg10[%c0_94, %c0_95] : memref<2x512xf32, #tpu.memory_space<vmem>>, vector<2x512xf32>
    tpu.vector_store %arg10[%c0_94, %c0_95], %257 {strides = array<i32>} : memref<2x512xf32, #tpu.memory_space<vmem>>, vector<2x512xf32>,
    return
  }
  func.func @transform_0(%arg0: i32) -> (i32, i32, i32) {
    %c0_i32 = arith.constant 0 : i32
    %c0_i32_0 = arith.constant 0 : i32
    %c0_i32_1 = arith.constant 0 : i32
    return %c0_i32, %arg0, %c0_i32_0 : i32, i32, i32
  }
  func.func @transform_1(%arg0: i32) -> (i32, i32) {
    %c0_i32 = arith.constant 0 : i32
    %c0_i32_0 = arith.constant 0 : i32
    %c0_i32_1 = arith.constant 0 : i32
    return %c0_i32, %c0_i32_0 : i32, i32
  }
  func.func @transform_2(%arg0: i32) -> (i32, i32) {
    %c0_i32 = arith.constant 0 : i32
    %c0_i32_0 = arith.constant 0 : i32
    %c0_i32_1 = arith.constant 0 : i32
    return %c0_i32, %c0_i32_0 : i32, i32
  }
  func.func @transform_3(%arg0: i32) -> (i32, i32) {
    %c0_i32 = arith.constant 0 : i32
    %c0_i32_0 = arith.constant 0 : i32
    %c0_i32_1 = arith.constant 0 : i32
    return %c0_i32, %c0_i32_0 : i32, i32
  }
  func.func @transform_4(%arg0: i32) -> (i32, i32) {
    %c0_i32 = arith.constant 0 : i32
    %c0_i32_0 = arith.constant 0 : i32
    %c0_i32_1 = arith.constant 0 : i32
    return %c0_i32, %c0_i32_0 : i32, i32
  }
  func.func @transform_5(%arg0: i32) -> (i32, i32) {
    %c0_i32 = arith.constant 0 : i32
    %c0_i32_0 = arith.constant 0 : i32
    %c0_i32_1 = arith.constant 0 : i32
    return %c0_i32, %c0_i32_0 : i32, i32
  }
  func.func @transform_6(%arg0: i32) -> (i32, i32) {
    %c0_i32 = arith.constant 0 : i32
    %c0_i32_0 = arith.constant 0 : i32
    %c0_i32_1 = arith.constant 0 : i32
    return %c0_i32, %c0_i32_0 : i32, i32
  }
  func.func @transform_7(%arg0: i32) -> (i32, i32) {
    %c0_i32 = arith.constant 0 : i32
    %c0_i32_0 = arith.constant 0 : i32
    %c0_i32_1 = arith.constant 0 : i32
    return %c0_i32, %c0_i32_0 : i32, i32
  }
  func.func @transform_8(%arg0: i32) -> (i32, i32) {
    %c0_i32 = arith.constant 0 : i32
    %c0_i32_0 = arith.constant 0 : i32
    return %arg0, %c0_i32 : i32, i32
  }
  func.func @transform_9(%arg0: i32) -> (i32, i32) {
    %c0_i32 = arith.constant 0 : i32
    %c0_i32_0 = arith.constant 0 : i32
    return %arg0, %c0_i32 : i32, i32
  }
}

</mosaic_0001>

<llo_original>
// kernel: tpu_custom_call.1
$region0: #{tpu_custom_call.1}
  #allocation0 [shape = 'u32[]', space=smem, size = 0x4, offset = 0x4, fixed_abs, tag = 'smem constant byte address 0x4 - core index']
  #allocation1 [shape = 'u32[144,128]{1,0:T(1,128)}', space=vmem, size = 0x12000, scoped, tag = 'internal scratch']
  %s0 = inlined_call_operand.hbm [shape: f32[6,2,32], index: 0, kind: input, shape index: {}]
  %s1 = inlined_call_operand.hbm [shape: f32[64,128], index: 1, kind: input, shape index: {}]
  %s2 = inlined_call_operand.vmem [shape: f32[1,128], index: 2, kind: input, shape index: {}]
  %s3 = inlined_call_operand.hbm [shape: f32[32,128], index: 3, kind: input, shape index: {}]
  %s4 = inlined_call_operand.vmem [shape: f32[1,128], index: 4, kind: input, shape index: {}]
  %s5 = inlined_call_operand.vmem [shape: f32[1,64], index: 5, kind: input, shape index: {}]
  %s6 = inlined_call_operand.vmem [shape: f32[1,64], index: 6, kind: input, shape index: {}]
  %s7 = inlined_call_operand.hbm [shape: f32[64,512], index: 7, kind: input, shape index: {}]
  %s8 = inlined_call_operand.vmem [shape: f32[2,512], index: 8, kind: input, shape index: {}]
  %s9 = inlined_call_operand.hbm [shape: f32[2,512], index: 9, kind: output, shape index: {}]
  %s10 = sld [smem:[#allocation0]]
  $region62: #{tpu_custom_call.1} parent=0
    _
  %s12 = ssub.s32 1, %s10
  %s13 = scalar_select 0, %s12, %s10
  $region1: #{tpu_custom_call.1} parent=0
    #allocation2 [shape = 'u8[6144]{0}', space=vmem, size = 0x1800, scoped, tag = 'input window, operand 0, single buffered']
    #allocation3 [shape = 's32[1]{0}', space=sflag, size = 0x4, scoped, tag = 'scoped memory for tpu_custom_call.1']
    #allocation4 [shape = 's32[1]{0}', space=sflag, size = 0x4, scoped, tag = 'scoped memory for tpu_custom_call.1']
    #allocation5 [shape = 'u8[32768]{0}', space=vmem, size = 0x8000, scoped, tag = 'input window, operand 1, single buffered']
    #allocation6 [shape = 's32[1]{0}', space=sflag, size = 0x4, scoped, tag = 'scoped memory for tpu_custom_call.1']
    #allocation7 [shape = 'u8[16384]{0}', space=vmem, size = 0x4000, scoped, tag = 'input window, operand 3, single buffered']
    #allocation8 [shape = 'u8[131072]{0}', space=vmem, size = 0x20000, scoped, tag = 'input window, operand 7, single buffered']
    #allocation9 [shape = 's32[1]{0}', space=sflag, size = 0x4, scoped, tag = 'scoped memory for tpu_custom_call.1']
    #allocation10 [shape = 'u8[4096]{0}', space=vmem, size = 0x1000, scoped, tag = 'output window, operand 0, single buffered']
    %14 = vsyncpa [#allocation3], 0
    %15 = vsyncpa [#allocation6], 0
    %16 = vsyncpa [#allocation9], 0
    %17 = vsyncpa [#allocation4], 0
    // Predicated region
    $region2: #{tpu_custom_call.1} parent=1 // pred_check
      _
    $region3: #{tpu_custom_call.1} parent=1 // pred_check_branch
      %19 = sbr.rel (0) target = $region5
    $region4: #{tpu_custom_call.1} parent=1 // pred_region
      %s21 = ssub.s32 192, 192
      %22 = vsyncadd [#allocation3], %s21
      %s23 = sshll.u32 [#allocation2], 4
      %s24 = int_to_ptr.vmem [resolvable:$true] %s23
      %29 = dma.hbm_to_vmem [thread:$0]  %s0, 192, %s24, [#allocation3], 32, 32, 2
    $region5: #{tpu_custom_call.1} parent=1 // pred_fallthru
      _
    // Predicated region
    $region6: #{tpu_custom_call.1} parent=1 // pred_check
      _
    $region7: #{tpu_custom_call.1} parent=1 // pred_check_branch
      %31 = sbr.rel (0) target = $region9
    $region8: #{tpu_custom_call.1} parent=1 // pred_region
      %s33 = ssub.s32 1024, 1024
      %34 = vsyncadd [#allocation6], %s33
      %s35 = sshll.u32 [#allocation5], 4
      %s36 = int_to_ptr.vmem [resolvable:$true] %s35
      %41 = dma.hbm_to_vmem [thread:$0]  %s1, 1024, %s36, [#allocation6], 128, 128, 8
    $region9: #{tpu_custom_call.1} parent=1 // pred_fallthru
      _
    // Predicated region
    $region10: #{tpu_custom_call.1} parent=1 // pred_check
      _
    $region11: #{tpu_custom_call.1} parent=1 // pred_check_branch
      %43 = sbr.rel (0) target = $region13
    $region12: #{tpu_custom_call.1} parent=1 // pred_region
      _
    $region13: #{tpu_custom_call.1} parent=1 // pred_fallthru
      _
    // Predicated region
    $region14: #{tpu_custom_call.1} parent=1 // pred_check
      _
    $region15: #{tpu_custom_call.1} parent=1 // pred_check_branch
      %45 = sbr.rel (0) target = $region17
    $region16: #{tpu_custom_call.1} parent=1 // pred_region
      %s47 = ssub.s32 512, 512
      %48 = vsyncadd [#allocation6], %s47
      %s49 = sshll.u32 [#allocation7], 4
      %s50 = int_to_ptr.vmem [resolvable:$true] %s49
      %55 = dma.hbm_to_vmem [thread:$0]  %s3, 512, %s50, [#allocation6], 128, 128, 8
    $region17: #{tpu_custom_call.1} parent=1 // pred_fallthru
      _
    // Predicated region
    $region18: #{tpu_custom_call.1} parent=1 // pred_check
      _
    $region19: #{tpu_custom_call.1} parent=1 // pred_check_branch
      %57 = sbr.rel (0) target = $region21
    $region20: #{tpu_custom_call.1} parent=1 // pred_region
      _
    $region21: #{tpu_custom_call.1} parent=1 // pred_fallthru
      _
    // Predicated region
    $region22: #{tpu_custom_call.1} parent=1 // pred_check
      _
    $region23: #{tpu_custom_call.1} parent=1 // pred_check_branch
      %59 = sbr.rel (0) target = $region25
    $region24: #{tpu_custom_call.1} parent=1 // pred_region
      _
    $region25: #{tpu_custom_call.1} parent=1 // pred_fallthru
      _
    // Predicated region
    $region26: #{tpu_custom_call.1} parent=1 // pred_check
      _
    $region27: #{tpu_custom_call.1} parent=1 // pred_check_branch
      %61 = sbr.rel (0) target = $region29
    $region28: #{tpu_custom_call.1} parent=1 // pred_region
      _
    $region29: #{tpu_custom_call.1} parent=1 // pred_fallthru
      _
    // Predicated region
    $region30: #{tpu_custom_call.1} parent=1 // pred_check
      _
    $region31: #{tpu_custom_call.1} parent=1 // pred_check_branch
      %63 = sbr.rel (0) target = $region33
    $region32: #{tpu_custom_call.1} parent=1 // pred_region
      %s65 = ssub.s32 4096, 4096
      %66 = vsyncadd [#allocation9], %s65
      %s67 = sshll.u32 [#allocation8], 4
      %s68 = int_to_ptr.vmem [resolvable:$true] %s67
      %73 = dma.hbm_to_vmem [thread:$0]  %s7, 4096, %s68, [#allocation9], 512, 512, 32
    $region33: #{tpu_custom_call.1} parent=1 // pred_fallthru
      _
    // Predicated region
    $region34: #{tpu_custom_call.1} parent=1 // pred_check
      _
    $region35: #{tpu_custom_call.1} parent=1 // pred_check_branch
      %75 = sbr.rel (0) target = $region37
    $region36: #{tpu_custom_call.1} parent=1 // pred_region
      _
    $region37: #{tpu_custom_call.1} parent=1 // pred_fallthru
      _
    // Predicated region
    $region38: #{tpu_custom_call.1} parent=1 // pred_check
      _
    $region39: #{tpu_custom_call.1} parent=1 // pred_check_branch
      %77 = sbr.rel (0) target = $region41
    $region40: #{tpu_custom_call.1} parent=1 // pred_region
      %78 = dma.done [#allocation3], 192
    $region41: #{tpu_custom_call.1} parent=1 // pred_fallthru
      _
    // Predicated region
    $region42: #{tpu_custom_call.1} parent=1 // pred_check
      _
    $region43: #{tpu_custom_call.1} parent=1 // pred_check_branch
      %80 = sbr.rel (0) target = $region45
    $region44: #{tpu_custom_call.1} parent=1 // pred_region
      %81 = dma.done [#allocation6], 1024
    $region45: #{tpu_custom_call.1} parent=1 // pred_fallthru
      _
    // Predicated region
    $region46: #{tpu_custom_call.1} parent=1 // pred_check
      _
    $region47: #{tpu_custom_call.1} parent=1 // pred_check_branch
      %83 = sbr.rel (0) target = $region49
    $region48: #{tpu_custom_call.1} parent=1 // pred_region
      %84 = dma.done [#allocation6], 512
    $region49: #{tpu_custom_call.1} parent=1 // pred_fallthru
      _
    // Predicated region
    $region50: #{tpu_custom_call.1} parent=1 // pred_check
      _
    $region51: #{tpu_custom_call.1} parent=1 // pred_check_branch
      %86 = sbr.rel (0) target = $region53
    $region52: #{tpu_custom_call.1} parent=1 // pred_region
      %87 = dma.done [#allocation9], 4096
    $region53: #{tpu_custom_call.1} parent=1 // pred_fallthru
      _
    %v88 = vld [vmem:[#allocation5] sm:$0xff]
    %v89 = vld [vmem:[#allocation5 + $0x8] sm:$0xff]
    %v90 = vld [vmem:[#allocation5 + $0x10] sm:$0xff]
    %v91 = vld [vmem:[#allocation5 + $0x18] sm:$0xff]
    %v92 = vld [vmem:[#allocation5 + $0x20] sm:$0xff]
    %v93 = vld [vmem:[#allocation5 + $0x28] sm:$0xff]
    %v94 = vld [vmem:[#allocation5 + $0x30] sm:$0xff]
    %v95 = vld [vmem:[#allocation5 + $0x38] sm:$0xff]
    %v96 = vld [vmem:[%s2] sm:$0x1]
    %v97 = vld [vmem:[#allocation2] sm:$0x3]
    %vm98 = vcmask 261120
    %v99 = vsel %vm98, %v97, 0.0
    %v101 = vlaneseq
    %v102 = vshrl.u32 %v101, 7
    %v103 = vsub.s32 0, %v102
    %v104 = vrot.slane %v96, %v103
    %vm106 = vcmask 523264
    %v108 = vsel %vm106, %v99, 0
    %110 = vmatprep.subr.mxu0 0.0
    %111 = vmatpush1.msra.mxu0 %v88
    %112 = vmatprep.subr.mxu0 0.0
    %113 = vmatpush1.msra.mxu0 %v89
    %114 = vmatprep.subr.mxu0 0.0
    %115 = vmatpush1.msra.mxu0 %v90
    %116 = vmatprep.subr.mxu0 0.0
    %117 = vmatpush1.msra.mxu0 %v91
    %118 = vmatprep.subr.mxu0 0.0
    %119 = vmatpush1.msra.mxu0 %v92
    %120 = vmatprep.subr.mxu0 0.0
    %121 = vmatpush1.msra.mxu0 %v93
    %122 = vmatprep.subr.mxu0 0.0
    %123 = vmatpush1.msra.mxu0 %v94
    %124 = vmatprep.subr.mxu0 0.0
    %125 = vmatpush1.msra.mxu0 %v95
    %126 = vmatprep.subr.mxu0 0.0
    %127 = vmatpush1.msra.mxu0 0.0
    %128 = vmatprep.subr.mxu0 0.0
    %129 = vmatpush1.msra.mxu0 0.0
    %130 = vmatprep.subr.mxu0 0.0
    %131 = vmatpush1.msra.mxu0 0.0
    %132 = vmatprep.subr.mxu0 0.0
    %133 = vmatpush1.msra.mxu0 0.0
    %134 = vmatprep.subr.mxu0 0.0
    %135 = vmatpush1.msra.mxu0 0.0
    %136 = vmatprep.subr.mxu0 0.0
    %137 = vmatpush1.msra.mxu0 0.0
    %138 = vmatprep.subr.mxu0 0.0
    %139 = vmatpush1.msra.mxu0 0.0
    %140 = vmatprep.subr.mxu0 0.0
    %141 = vmatpush1.msra.mxu0 0.0
    %142 = vmatprep.subr.mxu0 0.0
    %143 = vmatpush1.msra.mxu0 0.0
    %144 = vmatprep.subr.mxu0 0.0
    %145 = vmatpush1.msra.mxu0 0.0
    %146 = vmatprep.subr.mxu0 0.0
    %147 = vmatpush1.msra.mxu0 0.0
    %148 = vmatprep.subr.mxu0 0.0
    %149 = vmatpush1.msra.mxu0 0.0
    %150 = vmatprep.subr.mxu0 0.0
    %151 = vmatpush1.msra.mxu0 0.0
    %152 = vmatprep.subr.mxu0 0.0
    %153 = vmatpush1.msra.mxu0 0.0
    %154 = vmatprep.subr.mxu0 0.0
    %155 = vmatpush1.msra.mxu0 0.0
    %156 = vmatprep.subr.mxu0 0.0
    %157 = vmatpush1.msra.mxu0 0.0
    %158 = vmatprep.subr.mxu0 0.0
    %159 = vmatpush1.msra.mxu0 0.0
    %160 = vmatprep.subr.mxu0 0.0
    %161 = vmatpush1.msra.mxu0 0.0
    %162 = vmatprep.subr.mxu0 0.0
    %163 = vmatpush1.msra.mxu0 0.0
    %164 = vmatprep.subr.mxu0 0.0
    %165 = vmatpush1.msra.mxu0 0.0
    %166 = vmatprep.subr.mxu0 0.0
    %167 = vmatpush1.msra.mxu0 0.0
    %168 = vmatprep.subr.mxu0 0.0
    %169 = vmatpush1.msra.mxu0 0.0
    %170 = vmatprep.subr.mxu0 0.0
    %171 = vmatpush1.msra.mxu0 0.0
    %172 = vmatprep.subr.mxu0 0.0
    %173 = vmatpush1.msra.mxu0 0.0
    %174 = vmatprep.mubr.f32.mxu0 0.0
    %175 = vmatmul.mubr.f32.gmra.mrb[0].mxu0 %v108
    %v176 = vpop.f32.mrb[0].mxu0
    %v177 = vadd.f32 %v104, %v176
    %v178 = vpop.f32.mrb[0].mxu0
    %179 = vdwg.mxu0
    %v180 = vmul.f32 %v177, 0.5
    %v181 = vtanh.pop %v180
    %v182 = vmul.f32 %v181, 0.5
    %v183 = vadd.f32 %v182, 0.5
    %185 = vrot.lane.b32.xlu0 %v177, 32
    %v186 = vpop.permute.xlu0 %185
    %v188 = vmul.f32 %v183, %v186
    %190 = vrot.lane.b32.xlu0 %v188, 64
    %v191 = vpop.permute.xlu0 %190
    %v193 = vadd.f32 %v177, %v191
    %v194 = vtanh.pop %v193
    %v195 = vsub.f32 1.0, %v183
    %197 = vrot.lane.b32.xlu0 %v194, 96
    %v198 = vpop.permute.xlu0 %197
    %v200 = vmul.f32 %v195, %v198
    %v201 = vmul.f32 %v183, 0.0
    %v202 = vadd.f32 %v200, %v201
    %s203 = scalar_lea.vmem [#allocation2], 2
    %v204 = vld [vmem:[%s203] sm:$0x3]
    %v205 = vsel %vm98, %v204, %v202
    %v207 = vsel %vm106, %v205, 0
    %209 = vmatprep.subr.mxu0 0.0
    %210 = vmatpush1.msra.mxu0 %v88
    %211 = vmatprep.subr.mxu0 0.0
    %212 = vmatpush1.msra.mxu0 %v89
    %213 = vmatprep.subr.mxu0 0.0
    %214 = vmatpush1.msra.mxu0 %v90
    %215 = vmatprep.subr.mxu0 0.0
    %216 = vmatpush1.msra.mxu0 %v91
    %217 = vmatprep.subr.mxu0 0.0
    %218 = vmatpush1.msra.mxu0 %v92
    %219 = vmatprep.subr.mxu0 0.0
    %220 = vmatpush1.msra.mxu0 %v93
    %221 = vmatprep.subr.mxu0 0.0
    %222 = vmatpush1.msra.mxu0 %v94
    %223 = vmatprep.subr.mxu0 0.0
    %224 = vmatpush1.msra.mxu0 %v95
    %225 = vmatprep.subr.mxu0 0.0
    %226 = vmatpush1.msra.mxu0 0.0
    %227 = vmatprep.subr.mxu0 0.0
    %228 = vmatpush1.msra.mxu0 0.0
    %229 = vmatprep.subr.mxu0 0.0
    %230 = vmatpush1.msra.mxu0 0.0
    %231 = vmatprep.subr.mxu0 0.0
    %232 = vmatpush1.msra.mxu0 0.0
    %233 = vmatprep.subr.mxu0 0.0
    %234 = vmatpush1.msra.mxu0 0.0
    %235 = vmatprep.subr.mxu0 0.0
    %236 = vmatpush1.msra.mxu0 0.0
    %237 = vmatprep.subr.mxu0 0.0
    %238 = vmatpush1.msra.mxu0 0.0
    %239 = vmatprep.subr.mxu0 0.0
    %240 = vmatpush1.msra.mxu0 0.0
    %241 = vmatprep.subr.mxu0 0.0
    %242 = vmatpush1.msra.mxu0 0.0
    %243 = vmatprep.subr.mxu0 0.0
    %244 = vmatpush1.msra.mxu0 0.0
    %245 = vmatprep.subr.mxu0 0.0
    %246 = vmatpush1.msra.mxu0 0.0
    %247 = vmatprep.subr.mxu0 0.0
    %248 = vmatpush1.msra.mxu0 0.0
    %249 = vmatprep.subr.mxu0 0.0
    %250 = vmatpush1.msra.mxu0 0.0
    %251 = vmatprep.subr.mxu0 0.0
    %252 = vmatpush1.msra.mxu0 0.0
    %253 = vmatprep.subr.mxu0 0.0
    %254 = vmatpush1.msra.mxu0 0.0
    %255 = vmatprep.subr.mxu0 0.0
    %256 = vmatpush1.msra.mxu0 0.0
    %257 = vmatprep.subr.mxu0 0.0
    %258 = vmatpush1.msra.mxu0 0.0
    %259 = vmatprep.subr.mxu0 0.0
    %260 = vmatpush1.msra.mxu0 0.0
    %261 = vmatprep.subr.mxu0 0.0
    %262 = vmatpush1.msra.mxu0 0.0
    %263 = vmatprep.subr.mxu0 0.0
    %264 = vmatpush1.msra.mxu0 0.0
    %265 = vmatprep.subr.mxu0 0.0
    %266 = vmatpush1.msra.mxu0 0.0
    %267 = vmatprep.subr.mxu0 0.0
    %268 = vmatpush1.msra.mxu0 0.0
    %269 = vmatprep.subr.mxu0 0.0
    %270 = vmatpush1.msra.mxu0 0.0
    %271 = vmatprep.subr.mxu0 0.0
    %272 = vmatpush1.msra.mxu0 0.0
    %273 = vmatprep.mubr.f32.mxu0 0.0
    %274 = vmatmul.mubr.f32.gmra.mrb[0].mxu0 %v207
    %v275 = vpop.f32.mrb[0].mxu0
    %v276 = vadd.f32 %v104, %v275
    %v277 = vpop.f32.mrb[0].mxu0
    %278 = vdwg.mxu0
    %v279 = vmul.f32 %v276, 0.5
    %v280 = vtanh.pop %v279
    %v281 = vmul.f32 %v280, 0.5
    %v282 = vadd.f32 %v281, 0.5
    %284 = vrot.lane.b32.xlu0 %v276, 32
    %v285 = vpop.permute.xlu0 %284
    %v287 = vmul.f32 %v282, %v285
    %289 = vrot.lane.b32.xlu0 %v287, 64
    %v290 = vpop.permute.xlu0 %289
    %v292 = vadd.f32 %v276, %v290
    %v293 = vtanh.pop %v292
    %v294 = vsub.f32 1.0, %v282
    %296 = vrot.lane.b32.xlu0 %v293, 96
    %v297 = vpop.permute.xlu0 %296
    %v299 = vmul.f32 %v294, %v297
    %v300 = vmul.f32 %v282, %v202
    %v301 = vadd.f32 %v299, %v300
    %s302 = scalar_lea.vmem [#allocation2], 4
    %v303 = vld [vmem:[%s302] sm:$0x3]
    %v304 = vsel %vm98, %v303, %v301
    %v306 = vsel %vm106, %v304, 0
    %308 = vmatprep.subr.mxu0 0.0
    %309 = vmatpush1.msra.mxu0 %v88
    %310 = vmatprep.subr.mxu0 0.0
    %311 = vmatpush1.msra.mxu0 %v89
    %312 = vmatprep.subr.mxu0 0.0
    %313 = vmatpush1.msra.mxu0 %v90
    %314 = vmatprep.subr.mxu0 0.0
    %315 = vmatpush1.msra.mxu0 %v91
    %316 = vmatprep.subr.mxu0 0.0
    %317 = vmatpush1.msra.mxu0 %v92
    %318 = vmatprep.subr.mxu0 0.0
    %319 = vmatpush1.msra.mxu0 %v93
    %320 = vmatprep.subr.mxu0 0.0
    %321 = vmatpush1.msra.mxu0 %v94
    %322 = vmatprep.subr.mxu0 0.0
    %323 = vmatpush1.msra.mxu0 %v95
    %324 = vmatprep.subr.mxu0 0.0
    %325 = vmatpush1.msra.mxu0 0.0
    %326 = vmatprep.subr.mxu0 0.0
    %327 = vmatpush1.msra.mxu0 0.0
    %328 = vmatprep.subr.mxu0 0.0
    %329 = vmatpush1.msra.mxu0 0.0
    %330 = vmatprep.subr.mxu0 0.0
    %331 = vmatpush1.msra.mxu0 0.0
    %332 = vmatprep.subr.mxu0 0.0
    %333 = vmatpush1.msra.mxu0 0.0
    %334 = vmatprep.subr.mxu0 0.0
    %335 = vmatpush1.msra.mxu0 0.0
    %336 = vmatprep.subr.mxu0 0.0
    %337 = vmatpush1.msra.mxu0 0.0
    %338 = vmatprep.subr.mxu0 0.0
    %339 = vmatpush1.msra.mxu0 0.0
    %340 = vmatprep.subr.mxu0 0.0
    %341 = vmatpush1.msra.mxu0 0.0
    %342 = vmatprep.subr.mxu0 0.0
    %343 = vmatpush1.msra.mxu0 0.0
    %344 = vmatprep.subr.mxu0 0.0
    %345 = vmatpush1.msra.mxu0 0.0
    %346 = vmatprep.subr.mxu0 0.0
    %347 = vmatpush1.msra.mxu0 0.0
    %348 = vmatprep.subr.mxu0 0.0
    %349 = vmatpush1.msra.mxu0 0.0
    %350 = vmatprep.subr.mxu0 0.0
    %351 = vmatpush1.msra.mxu0 0.0
    %352 = vmatprep.subr.mxu0 0.0
    %353 = vmatpush1.msra.mxu0 0.0
    %354 = vmatprep.subr.mxu0 0.0
    %355 = vmatpush1.msra.mxu0 0.0
    %356 = vmatprep.subr.mxu0 0.0
    %357 = vmatpush1.msra.mxu0 0.0
    %358 = vmatprep.subr.mxu0 0.0
    %359 = vmatpush1.msra.mxu0 0.0
    %360 = vmatprep.subr.mxu0 0.0
    %361 = vmatpush1.msra.mxu0 0.0
    %362 = vmatprep.subr.mxu0 0.0
    %363 = vmatpush1.msra.mxu0 0.0
    %364 = vmatprep.subr.mxu0 0.0
    %365 = vmatpush1.msra.mxu0 0.0
    %366 = vmatprep.subr.mxu0 0.0
    %367 = vmatpush1.msra.mxu0 0.0
    %368 = vmatprep.subr.mxu0 0.0
    %369 = vmatpush1.msra.mxu0 0.0
    %370 = vmatprep.subr.mxu0 0.0
    %371 = vmatpush1.msra.mxu0 0.0
    %372 = vmatprep.mubr.f32.mxu0 0.0
    %373 = vmatmul.mubr.f32.gmra.mrb[0].mxu0 %v306
    %v374 = vpop.f32.mrb[0].mxu0
    %v375 = vadd.f32 %v104, %v374
    %v376 = vpop.f32.mrb[0].mxu0
    %377 = vdwg.mxu0
    %v378 = vmul.f32 %v375, 0.5
    %v379 = vtanh.pop %v378
    %v380 = vmul.f32 %v379, 0.5
    %v381 = vadd.f32 %v380, 0.5
    %383 = vrot.lane.b32.xlu0 %v375, 32
    %v384 = vpop.permute.xlu0 %383
    %v386 = vmul.f32 %v381, %v384
    %388 = vrot.lane.b32.xlu0 %v386, 64
    %v389 = vpop.permute.xlu0 %388
    %v391 = vadd.f32 %v375, %v389
    %v392 = vtanh.pop %v391
    %v393 = vsub.f32 1.0, %v381
    %395 = vrot.lane.b32.xlu0 %v392, 96
    %v396 = vpop.permute.xlu0 %395
    %v398 = vmul.f32 %v393, %v396
    %v399 = vmul.f32 %v381, %v301
    %v400 = vadd.f32 %v398, %v399
    %s401 = scalar_lea.vmem [#allocation2], 6
    %v402 = vld [vmem:[%s401] sm:$0x3]
    %v403 = vsel %vm98, %v402, %v400
    %v405 = vsel %vm106, %v403, 0
    %407 = vmatprep.subr.mxu0 0.0
    %408 = vmatpush1.msra.mxu0 %v88
    %409 = vmatprep.subr.mxu0 0.0
    %410 = vmatpush1.msra.mxu0 %v89
    %411 = vmatprep.subr.mxu0 0.0
    %412 = vmatpush1.msra.mxu0 %v90
    %413 = vmatprep.subr.mxu0 0.0
    %414 = vmatpush1.msra.mxu0 %v91
    %415 = vmatprep.subr.mxu0 0.0
    %416 = vmatpush1.msra.mxu0 %v92
    %417 = vmatprep.subr.mxu0 0.0
    %418 = vmatpush1.msra.mxu0 %v93
    %419 = vmatprep.subr.mxu0 0.0
    %420 = vmatpush1.msra.mxu0 %v94
    %421 = vmatprep.subr.mxu0 0.0
    %422 = vmatpush1.msra.mxu0 %v95
    %423 = vmatprep.subr.mxu0 0.0
    %424 = vmatpush1.msra.mxu0 0.0
    %425 = vmatprep.subr.mxu0 0.0
    %426 = vmatpush1.msra.mxu0 0.0
    %427 = vmatprep.subr.mxu0 0.0
    %428 = vmatpush1.msra.mxu0 0.0
    %429 = vmatprep.subr.mxu0 0.0
    %430 = vmatpush1.msra.mxu0 0.0
    %431 = vmatprep.subr.mxu0 0.0
    %432 = vmatpush1.msra.mxu0 0.0
    %433 = vmatprep.subr.mxu0 0.0
    %434 = vmatpush1.msra.mxu0 0.0
    %435 = vmatprep.subr.mxu0 0.0
    %436 = vmatpush1.msra.mxu0 0.0
    %437 = vmatprep.subr.mxu0 0.0
    %438 = vmatpush1.msra.mxu0 0.0
    %439 = vmatprep.subr.mxu0 0.0
    %440 = vmatpush1.msra.mxu0 0.0
    %441 = vmatprep.subr.mxu0 0.0
    %442 = vmatpush1.msra.mxu0 0.0
    %443 = vmatprep.subr.mxu0 0.0
    %444 = vmatpush1.msra.mxu0 0.0
    %445 = vmatprep.subr.mxu0 0.0
    %446 = vmatpush1.msra.mxu0 0.0
    %447 = vmatprep.subr.mxu0 0.0
    %448 = vmatpush1.msra.mxu0 0.0
    %449 = vmatprep.subr.mxu0 0.0
    %450 = vmatpush1.msra.mxu0 0.0
    %451 = vmatprep.subr.mxu0 0.0
    %452 = vmatpush1.msra.mxu0 0.0
    %453 = vmatprep.subr.mxu0 0.0
    %454 = vmatpush1.msra.mxu0 0.0
    %455 = vmatprep.subr.mxu0 0.0
    %456 = vmatpush1.msra.mxu0 0.0
    %457 = vmatprep.subr.mxu0 0.0
    %458 = vmatpush1.msra.mxu0 0.0
    %459 = vmatprep.subr.mxu0 0.0
    %460 = vmatpush1.msra.mxu0 0.0
    %461 = vmatprep.subr.mxu0 0.0
    %462 = vmatpush1.msra.mxu0 0.0
    %463 = vmatprep.subr.mxu0 0.0
    %464 = vmatpush1.msra.mxu0 0.0
    %465 = vmatprep.subr.mxu0 0.0
    %466 = vmatpush1.msra.mxu0 0.0
    %467 = vmatprep.subr.mxu0 0.0
    %468 = vmatpush1.msra.mxu0 0.0
    %469 = vmatprep.subr.mxu0 0.0
    %470 = vmatpush1.msra.mxu0 0.0
    %471 = vmatprep.mubr.f32.mxu0 0.0
    %472 = vmatmul.mubr.f32.gmra.mrb[0].mxu0 %v405
    %v473 = vpop.f32.mrb[0].mxu0
    %v474 = vadd.f32 %v104, %v473
    %v475 = vpop.f32.mrb[0].mxu0
    %476 = vdwg.mxu0
    %v477 = vmul.f32 %v474, 0.5
    %v478 = vtanh.pop %v477
    %v479 = vmul.f32 %v478, 0.5
    %v480 = vadd.f32 %v479, 0.5
    %482 = vrot.lane.b32.xlu0 %v474, 32
    %v483 = vpop.permute.xlu0 %482
    %v485 = vmul.f32 %v480, %v483
    %487 = vrot.lane.b32.xlu0 %v485, 64
    %v488 = vpop.permute.xlu0 %487
    %v490 = vadd.f32 %v474, %v488
    %v491 = vtanh.pop %v490
    %v492 = vsub.f32 1.0, %v480
    %494 = vrot.lane.b32.xlu0 %v491, 96
    %v495 = vpop.permute.xlu0 %494
    %v497 = vmul.f32 %v492, %v495
    %v498 = vmul.f32 %v480, %v400
    %v499 = vadd.f32 %v497, %v498
    %s500 = scalar_lea.vmem [#allocation2], 8
    %v501 = vld [vmem:[%s500] sm:$0x3]
    %v502 = vsel %vm98, %v501, %v499
    %v504 = vsel %vm106, %v502, 0
    %506 = vmatprep.subr.mxu0 0.0
    %507 = vmatpush1.msra.mxu0 %v88
    %508 = vmatprep.subr.mxu0 0.0
    %509 = vmatpush1.msra.mxu0 %v89
    %510 = vmatprep.subr.mxu0 0.0
    %511 = vmatpush1.msra.mxu0 %v90
    %512 = vmatprep.subr.mxu0 0.0
    %513 = vmatpush1.msra.mxu0 %v91
    %514 = vmatprep.subr.mxu0 0.0
    %515 = vmatpush1.msra.mxu0 %v92
    %516 = vmatprep.subr.mxu0 0.0
    %517 = vmatpush1.msra.mxu0 %v93
    %518 = vmatprep.subr.mxu0 0.0
    %519 = vmatpush1.msra.mxu0 %v94
    %520 = vmatprep.subr.mxu0 0.0
    %521 = vmatpush1.msra.mxu0 %v95
    %522 = vmatprep.subr.mxu0 0.0
    %523 = vmatpush1.msra.mxu0 0.0
    %524 = vmatprep.subr.mxu0 0.0
    %525 = vmatpush1.msra.mxu0 0.0
    %526 = vmatprep.subr.mxu0 0.0
    %527 = vmatpush1.msra.mxu0 0.0
    %528 = vmatprep.subr.mxu0 0.0
    %529 = vmatpush1.msra.mxu0 0.0
    %530 = vmatprep.subr.mxu0 0.0
    %531 = vmatpush1.msra.mxu0 0.0
    %532 = vmatprep.subr.mxu0 0.0
    %533 = vmatpush1.msra.mxu0 0.0
    %534 = vmatprep.subr.mxu0 0.0
    %535 = vmatpush1.msra.mxu0 0.0
    %536 = vmatprep.subr.mxu0 0.0
    %537 = vmatpush1.msra.mxu0 0.0
    %538 = vmatprep.subr.mxu0 0.0
    %539 = vmatpush1.msra.mxu0 0.0
    %540 = vmatprep.subr.mxu0 0.0
    %541 = vmatpush1.msra.mxu0 0.0
    %542 = vmatprep.subr.mxu0 0.0
    %543 = vmatpush1.msra.mxu0 0.0
    %544 = vmatprep.subr.mxu0 0.0
    %545 = vmatpush1.msra.mxu0 0.0
    %546 = vmatprep.subr.mxu0 0.0
    %547 = vmatpush1.msra.mxu0 0.0
    %548 = vmatprep.subr.mxu0 0.0
    %549 = vmatpush1.msra.mxu0 0.0
    %550 = vmatprep.subr.mxu0 0.0
    %551 = vmatpush1.msra.mxu0 0.0
    %552 = vmatprep.subr.mxu0 0.0
    %553 = vmatpush1.msra.mxu0 0.0
    %554 = vmatprep.subr.mxu0 0.0
    %555 = vmatpush1.msra.mxu0 0.0
    %556 = vmatprep.subr.mxu0 0.0
    %557 = vmatpush1.msra.mxu0 0.0
    %558 = vmatprep.subr.mxu0 0.0
    %559 = vmatpush1.msra.mxu0 0.0
    %560 = vmatprep.subr.mxu0 0.0
    %561 = vmatpush1.msra.mxu0 0.0
    %562 = vmatprep.subr.mxu0 0.0
    %563 = vmatpush1.msra.mxu0 0.0
    %564 = vmatprep.subr.mxu0 0.0
    %565 = vmatpush1.msra.mxu0 0.0
    %566 = vmatprep.subr.mxu0 0.0
    %567 = vmatpush1.msra.mxu0 0.0
    %568 = vmatprep.subr.mxu0 0.0
    %569 = vmatpush1.msra.mxu0 0.0
    %570 = vmatprep.mubr.f32.mxu0 0.0
    %571 = vmatmul.mubr.f32.gmra.mrb[0].mxu0 %v504
    %v572 = vpop.f32.mrb[0].mxu0
    %v573 = vadd.f32 %v104, %v572
    %v574 = vpop.f32.mrb[0].mxu0
    %575 = vdwg.mxu0
    %v576 = vmul.f32 %v573, 0.5
    %v577 = vtanh.pop %v576
    %v578 = vmul.f32 %v577, 0.5
    %v579 = vadd.f32 %v578, 0.5
    %581 = vrot.lane.b32.xlu0 %v573, 32
    %v582 = vpop.permute.xlu0 %581
    %v584 = vmul.f32 %v579, %v582
    %586 = vrot.lane.b32.xlu0 %v584, 64
    %v587 = vpop.permute.xlu0 %586
    %v589 = vadd.f32 %v573, %v587
    %v590 = vtanh.pop %v589
    %v591 = vsub.f32 1.0, %v579
    %593 = vrot.lane.b32.xlu0 %v590, 96
    %v594 = vpop.permute.xlu0 %593
    %v596 = vmul.f32 %v591, %v594
    %v597 = vmul.f32 %v579, %v499
    %v598 = vadd.f32 %v596, %v597
    %s599 = scalar_lea.vmem [#allocation2], 10
    %v600 = vld [vmem:[%s599] sm:$0x3]
    %v601 = vsel %vm98, %v600, %v598
    %v603 = vsel %vm106, %v601, 0
    %605 = vmatprep.subr.mxu0 0.0
    %606 = vmatpush1.msra.mxu0 %v88
    %607 = vmatprep.subr.mxu0 0.0
    %608 = vmatpush1.msra.mxu0 %v89
    %609 = vmatprep.subr.mxu0 0.0
    %610 = vmatpush1.msra.mxu0 %v90
    %611 = vmatprep.subr.mxu0 0.0
    %612 = vmatpush1.msra.mxu0 %v91
    %613 = vmatprep.subr.mxu0 0.0
    %614 = vmatpush1.msra.mxu0 %v92
    %615 = vmatprep.subr.mxu0 0.0
    %616 = vmatpush1.msra.mxu0 %v93
    %617 = vmatprep.subr.mxu0 0.0
    %618 = vmatpush1.msra.mxu0 %v94
    %619 = vmatprep.subr.mxu0 0.0
    %620 = vmatpush1.msra.mxu0 %v95
    %621 = vmatprep.subr.mxu0 0.0
    %622 = vmatpush1.msra.mxu0 0.0
    %623 = vmatprep.subr.mxu0 0.0
    %624 = vmatpush1.msra.mxu0 0.0
    %625 = vmatprep.subr.mxu0 0.0
    %626 = vmatpush1.msra.mxu0 0.0
    %627 = vmatprep.subr.mxu0 0.0
    %628 = vmatpush1.msra.mxu0 0.0
    %629 = vmatprep.subr.mxu0 0.0
    %630 = vmatpush1.msra.mxu0 0.0
    %631 = vmatprep.subr.mxu0 0.0
    %632 = vmatpush1.msra.mxu0 0.0
    %633 = vmatprep.subr.mxu0 0.0
    %634 = vmatpush1.msra.mxu0 0.0
    %635 = vmatprep.subr.mxu0 0.0
    %636 = vmatpush1.msra.mxu0 0.0
    %637 = vmatprep.subr.mxu0 0.0
    %638 = vmatpush1.msra.mxu0 0.0
    %639 = vmatprep.subr.mxu0 0.0
    %640 = vmatpush1.msra.mxu0 0.0
    %641 = vmatprep.subr.mxu0 0.0
    %642 = vmatpush1.msra.mxu0 0.0
    %643 = vmatprep.subr.mxu0 0.0
    %644 = vmatpush1.msra.mxu0 0.0
    %645 = vmatprep.subr.mxu0 0.0
    %646 = vmatpush1.msra.mxu0 0.0
    %647 = vmatprep.subr.mxu0 0.0
    %648 = vmatpush1.msra.mxu0 0.0
    %649 = vmatprep.subr.mxu0 0.0
    %650 = vmatpush1.msra.mxu0 0.0
    %651 = vmatprep.subr.mxu0 0.0
    %652 = vmatpush1.msra.mxu0 0.0
    %653 = vmatprep.subr.mxu0 0.0
    %654 = vmatpush1.msra.mxu0 0.0
    %655 = vmatprep.subr.mxu0 0.0
    %656 = vmatpush1.msra.mxu0 0.0
    %657 = vmatprep.subr.mxu0 0.0
    %658 = vmatpush1.msra.mxu0 0.0
    %659 = vmatprep.subr.mxu0 0.0
    %660 = vmatpush1.msra.mxu0 0.0
    %661 = vmatprep.subr.mxu0 0.0
    %662 = vmatpush1.msra.mxu0 0.0
    %663 = vmatprep.subr.mxu0 0.0
    %664 = vmatpush1.msra.mxu0 0.0
    %665 = vmatprep.subr.mxu0 0.0
    %666 = vmatpush1.msra.mxu0 0.0
    %667 = vmatprep.subr.mxu0 0.0
    %668 = vmatpush1.msra.mxu0 0.0
    %669 = vmatprep.mubr.f32.mxu0 0.0
    %670 = vmatmul.mubr.f32.gmra.mrb[0].mxu0 %v603
    %v671 = vpop.f32.mrb[0].mxu0
    %v672 = vadd.f32 %v104, %v671
    %v673 = vpop.f32.mrb[0].mxu0
    %674 = vdwg.mxu0
    %v675 = vmul.f32 %v672, 0.5
    %v676 = vtanh.pop %v675
    %v677 = vmul.f32 %v676, 0.5
    %v678 = vadd.f32 %v677, 0.5
    %680 = vrot.lane.b32.xlu0 %v672, 32
    %v681 = vpop.permute.xlu0 %680
    %v683 = vmul.f32 %v678, %v681
    %685 = vrot.lane.b32.xlu0 %v683, 64
    %v686 = vpop.permute.xlu0 %685
    %v688 = vadd.f32 %v672, %v686
    %v689 = vtanh.pop %v688
    %v690 = vsub.f32 1.0, %v678
    %692 = vrot.lane.b32.xlu0 %v689, 96
    %v693 = vpop.permute.xlu0 %692
    %v695 = vmul.f32 %v690, %v693
    %v696 = vmul.f32 %v678, %v598
    %v697 = vadd.f32 %v695, %v696
    %v698 = vld [vmem:[#allocation7] sm:$0xff]
    %v699 = vld [vmem:[#allocation7 + $0x8] sm:$0xff]
    %v700 = vld [vmem:[#allocation7 + $0x10] sm:$0xff]
    %v701 = vld [vmem:[#allocation7 + $0x18] sm:$0xff]
    %v702 = vld [vmem:[%s4] sm:$0x1]
    %v704 = vlaneseq
    %v705 = vshrl.u32 %v704, 7
    %v706 = vsub.s32 0, %v705
    %v707 = vrot.slane %v702, %v706
    %v710 = vsel %vm98, %v600, 0
    %712 = vmatprep.subr.mxu0 0.0
    %713 = vmatpush1.msra.mxu0 %v698
    %714 = vmatprep.subr.mxu0 0.0
    %715 = vmatpush1.msra.mxu0 %v699
    %716 = vmatprep.subr.mxu0 0.0
    %717 = vmatpush1.msra.mxu0 %v700
    %718 = vmatprep.subr.mxu0 0.0
    %719 = vmatpush1.msra.mxu0 %v701
    %720 = vmatprep.subr.mxu0 0.0
    %721 = vmatpush1.msra.mxu0 0.0
    %722 = vmatprep.subr.mxu0 0.0
    %723 = vmatpush1.msra.mxu0 0.0
    %724 = vmatprep.subr.mxu0 0.0
    %725 = vmatpush1.msra.mxu0 0.0
    %726 = vmatprep.subr.mxu0 0.0
    %727 = vmatpush1.msra.mxu0 0.0
    %728 = vmatprep.subr.mxu0 0.0
    %729 = vmatpush1.msra.mxu0 0.0
    %730 = vmatprep.subr.mxu0 0.0
    %731 = vmatpush1.msra.mxu0 0.0
    %732 = vmatprep.subr.mxu0 0.0
    %733 = vmatpush1.msra.mxu0 0.0
    %734 = vmatprep.subr.mxu0 0.0
    %735 = vmatpush1.msra.mxu0 0.0
    %736 = vmatprep.subr.mxu0 0.0
    %737 = vmatpush1.msra.mxu0 0.0
    %738 = vmatprep.subr.mxu0 0.0
    %739 = vmatpush1.msra.mxu0 0.0
    %740 = vmatprep.subr.mxu0 0.0
    %741 = vmatpush1.msra.mxu0 0.0
    %742 = vmatprep.subr.mxu0 0.0
    %743 = vmatpush1.msra.mxu0 0.0
    %744 = vmatprep.subr.mxu0 0.0
    %745 = vmatpush1.msra.mxu0 0.0
    %746 = vmatprep.subr.mxu0 0.0
    %747 = vmatpush1.msra.mxu0 0.0
    %748 = vmatprep.subr.mxu0 0.0
    %749 = vmatpush1.msra.mxu0 0.0
    %750 = vmatprep.subr.mxu0 0.0
    %751 = vmatpush1.msra.mxu0 0.0
    %752 = vmatprep.subr.mxu0 0.0
    %753 = vmatpush1.msra.mxu0 0.0
    %754 = vmatprep.subr.mxu0 0.0
    %755 = vmatpush1.msra.mxu0 0.0
    %756 = vmatprep.subr.mxu0 0.0
    %757 = vmatpush1.msra.mxu0 0.0
    %758 = vmatprep.subr.mxu0 0.0
    %759 = vmatpush1.msra.mxu0 0.0
    %760 = vmatprep.subr.mxu0 0.0
    %761 = vmatpush1.msra.mxu0 0.0
    %762 = vmatprep.subr.mxu0 0.0
    %763 = vmatpush1.msra.mxu0 0.0
    %764 = vmatprep.subr.mxu0 0.0
    %765 = vmatpush1.msra.mxu0 0.0
    %766 = vmatprep.subr.mxu0 0.0
    %767 = vmatpush1.msra.mxu0 0.0
    %768 = vmatprep.subr.mxu0 0.0
    %769 = vmatpush1.msra.mxu0 0.0
    %770 = vmatprep.subr.mxu0 0.0
    %771 = vmatpush1.msra.mxu0 0.0
    %772 = vmatprep.subr.mxu0 0.0
    %773 = vmatpush1.msra.mxu0 0.0
    %774 = vmatprep.subr.mxu0 0.0
    %775 = vmatpush1.msra.mxu0 0.0
    %776 = vmatprep.mubr.f32.mxu0 0.0
    %777 = vmatmul.mubr.f32.gmra.mrb[0].mxu0 %v710
    %v778 = vpop.f32.mrb[0].mxu0
    %v779 = vadd.f32 %v707, %v778
    %v780 = vpop.f32.mrb[0].mxu0
    %781 = vdwg.mxu0
    %v782 = vmul.f32 %v779, 0.5
    %v783 = vtanh.pop %v782
    %v784 = vmul.f32 %v783, 0.5
    %v785 = vadd.f32 %v784, 0.5
    %787 = vrot.lane.b32.xlu0 %v779, 32
    %v788 = vpop.permute.xlu0 %787
    %v790 = vmul.f32 %v785, %v788
    %792 = vrot.lane.b32.xlu0 %v790, 64
    %v793 = vpop.permute.xlu0 %792
    %v795 = vadd.f32 %v779, %v793
    %v796 = vtanh.pop %v795
    %v797 = vsub.f32 1.0, %v785
    %799 = vrot.lane.b32.xlu0 %v796, 96
    %v800 = vpop.permute.xlu0 %799
    %v802 = vmul.f32 %v797, %v800
    %v803 = vmul.f32 %v785, 0.0
    %v804 = vadd.f32 %v802, %v803
    %806 = vrot.lane.b32.xlu0 %v697, 96
    %v807 = vpop.permute.xlu0 %806
    %v809 = vsel %vm98, %v807, %v804
    %vm810 = vcmask 517120
    %v811 = vsel %vm810, %v809, 0.0
    %812 = vadd.xlane.f32.xlu0 %v811
    %v813 = vpop.xlane.xlu0 %812
    %v814 = vrcp.pop 64.0
    %v815 = vmul.f32 %v813, %v814
    %v816 = vsub.f32 %v809, %v815
    %v817 = vmul.f32 %v816, %v816
    %v818 = vsel %vm810, %v817, 0.0
    %819 = vadd.xlane.f32.xlu0 %v818
    %v820 = vpop.xlane.xlu0 %819
    %v821 = vrcp.pop 63.0
    %v822 = vmul.f32 %v820, %v821
    %v823 = vmax.f32 %v822, 1e-12
    %v824 = vrsqrt.pop %v823
    %v825 = vmul.f32 %v816, %v824
    %v826 = vld [vmem:[%s5] sm:$0x1]
    %v828 = vlaneseq
    %v829 = vshrl.u32 %v828, 7
    %v830 = vsub.s32 0, %v829
    %v831 = vrot.slane %v826, %v830
    %v833 = vmul.f32 %v825, %v831
    %v834 = vld [vmem:[%s6] sm:$0x1]
    %v836 = vlaneseq
    %v837 = vshrl.u32 %v836, 7
    %v838 = vsub.s32 0, %v837
    %v839 = vrot.slane %v834, %v838
    %v841 = vadd.f32 %v833, %v839
    %v842 = vld [vmem:[#allocation8] sm:$0xff]
    %v843 = vld [vmem:[#allocation8 + $0x8] sm:$0xff]
    %v844 = vld [vmem:[#allocation8 + $0x10] sm:$0xff]
    %v845 = vld [vmem:[#allocation8 + $0x18] sm:$0xff]
    %v846 = vld [vmem:[#allocation8 + $0x20] sm:$0xff]
    %v847 = vld [vmem:[#allocation8 + $0x28] sm:$0xff]
    %v848 = vld [vmem:[#allocation8 + $0x30] sm:$0xff]
    %v849 = vld [vmem:[#allocation8 + $0x38] sm:$0xff]
    %v850 = vld [vmem:[#allocation8 + $0x40] sm:$0xff]
    %v851 = vld [vmem:[#allocation8 + $0x48] sm:$0xff]
    %v852 = vld [vmem:[#allocation8 + $0x50] sm:$0xff]
    %v853 = vld [vmem:[#allocation8 + $0x58] sm:$0xff]
    %v854 = vld [vmem:[#allocation8 + $0x60] sm:$0xff]
    %v855 = vld [vmem:[#allocation8 + $0x68] sm:$0xff]
    %v856 = vld [vmem:[#allocation8 + $0x70] sm:$0xff]
    %v857 = vld [vmem:[#allocation8 + $0x78] sm:$0xff]
    %v858 = vld [vmem:[#allocation8 + $0x80] sm:$0xff]
    %v859 = vld [vmem:[#allocation8 + $0x88] sm:$0xff]
    %v860 = vld [vmem:[#allocation8 + $0x90] sm:$0xff]
    %v861 = vld [vmem:[#allocation8 + $0x98] sm:$0xff]
    %v862 = vld [vmem:[#allocation8 + $0xa0] sm:$0xff]
    %v863 = vld [vmem:[#allocation8 + $0xa8] sm:$0xff]
    %v864 = vld [vmem:[#allocation8 + $0xb0] sm:$0xff]
    %v865 = vld [vmem:[#allocation8 + $0xb8] sm:$0xff]
    %v866 = vld [vmem:[#allocation8 + $0xc0] sm:$0xff]
    %v867 = vld [vmem:[#allocation8 + $0xc8] sm:$0xff]
    %v868 = vld [vmem:[#allocation8 + $0xd0] sm:$0xff]
    %v869 = vld [vmem:[#allocation8 + $0xd8] sm:$0xff]
    %v870 = vld [vmem:[#allocation8 + $0xe0] sm:$0xff]
    %v871 = vld [vmem:[#allocation8 + $0xe8] sm:$0xff]
    %v872 = vld [vmem:[#allocation8 + $0xf0] sm:$0xff]
    %v873 = vld [vmem:[#allocation8 + $0xf8] sm:$0xff]
    %v875 = vsel %vm106, %v841, 0
    %877 = vmatprep.subr.mxu0 %v843
    %878 = vmatpush1.msra.mxu0 %v842
    %879 = vmatprep.subr.mxu0 %v847
    %880 = vmatpush1.msra.mxu0 %v846
    %881 = vmatprep.subr.mxu0 %v851
    %882 = vmatpush1.msra.mxu0 %v850
    %883 = vmatprep.subr.mxu0 %v855
    %884 = vmatpush1.msra.mxu0 %v854
    %885 = vmatprep.subr.mxu0 %v859
    %886 = vmatpush1.msra.mxu0 %v858
    %887 = vmatprep.subr.mxu0 %v863
    %888 = vmatpush1.msra.mxu0 %v862
    %889 = vmatprep.subr.mxu0 %v867
    %890 = vmatpush1.msra.mxu0 %v866
    %891 = vmatprep.subr.mxu0 %v871
    %892 = vmatpush1.msra.mxu0 %v870
    %893 = vmatprep.subr.mxu0 0.0
    %894 = vmatpush1.msra.mxu0 0.0
    %895 = vmatprep.subr.mxu0 0.0
    %896 = vmatpush1.msra.mxu0 0.0
    %897 = vmatprep.subr.mxu0 0.0
    %898 = vmatpush1.msra.mxu0 0.0
    %899 = vmatprep.subr.mxu0 0.0
    %900 = vmatpush1.msra.mxu0 0.0
    %901 = vmatprep.subr.mxu0 0.0
    %902 = vmatpush1.msra.mxu0 0.0
    %903 = vmatprep.subr.mxu0 0.0
    %904 = vmatpush1.msra.mxu0 0.0
    %905 = vmatprep.subr.mxu0 0.0
    %906 = vmatpush1.msra.mxu0 0.0
    %907 = vmatprep.subr.mxu0 0.0
    %908 = vmatpush1.msra.mxu0 0.0
    %909 = vmatprep.subr.mxu0 0.0
    %910 = vmatpush1.msra.mxu0 0.0
    %911 = vmatprep.subr.mxu0 0.0
    %912 = vmatpush1.msra.mxu0 0.0
    %913 = vmatprep.subr.mxu0 0.0
    %914 = vmatpush1.msra.mxu0 0.0
    %915 = vmatprep.subr.mxu0 0.0
    %916 = vmatpush1.msra.mxu0 0.0
    %917 = vmatprep.subr.mxu0 0.0
    %918 = vmatpush1.msra.mxu0 0.0
    %919 = vmatprep.subr.mxu0 0.0
    %920 = vmatpush1.msra.mxu0 0.0
    %921 = vmatprep.subr.mxu0 0.0
    %922 = vmatpush1.msra.mxu0 0.0
    %923 = vmatprep.subr.mxu0 0.0
    %924 = vmatpush1.msra.mxu0 0.0
    %925 = vmatprep.subr.mxu0 0.0
    %926 = vmatpush1.msra.mxu0 0.0
    %927 = vmatprep.subr.mxu0 0.0
    %928 = vmatpush1.msra.mxu0 0.0
    %929 = vmatprep.subr.mxu0 0.0
    %930 = vmatpush1.msra.mxu0 0.0
    %931 = vmatprep.subr.mxu0 0.0
    %932 = vmatpush1.msra.mxu0 0.0
    %933 = vmatprep.subr.mxu0 0.0
    %934 = vmatpush1.msra.mxu0 0.0
    %935 = vmatprep.subr.mxu0 0.0
    %936 = vmatpush1.msra.mxu0 0.0
    %937 = vmatprep.subr.mxu0 0.0
    %938 = vmatpush1.msra.mxu0 0.0
    %939 = vmatprep.subr.mxu0 0.0
    %940 = vmatpush1.msra.mxu0 0.0
    %941 = vmatprep.mubr.f32.mxu0 0.0
    %942 = vmatmul.mubr.f32.gmra.mrb[0].mxu0 %v875
    %v943 = vpop.f32.mrb[0].mxu0
    %v944 = vadd.f32 0.0, %v943
    %v945 = vpop.f32.mrb[0].mxu0
    %v946 = vadd.f32 0.0, %v945
    %947 = vdwg.mxu0
    %948 = vmatprep.subr.mxu0 %v845
    %949 = vmatpush1.msra.mxu0 %v844
    %950 = vmatprep.subr.mxu0 %v849
    %951 = vmatpush1.msra.mxu0 %v848
    %952 = vmatprep.subr.mxu0 %v853
    %953 = vmatpush1.msra.mxu0 %v852
    %954 = vmatprep.subr.mxu0 %v857
    %955 = vmatpush1.msra.mxu0 %v856
    %956 = vmatprep.subr.mxu0 %v861
    %957 = vmatpush1.msra.mxu0 %v860
    %958 = vmatprep.subr.mxu0 %v865
    %959 = vmatpush1.msra.mxu0 %v864
    %960 = vmatprep.subr.mxu0 %v869
    %961 = vmatpush1.msra.mxu0 %v868
    %962 = vmatprep.subr.mxu0 %v873
    %963 = vmatpush1.msra.mxu0 %v872
    %964 = vmatprep.subr.mxu0 0.0
    %965 = vmatpush1.msra.mxu0 0.0
    %966 = vmatprep.subr.mxu0 0.0
    %967 = vmatpush1.msra.mxu0 0.0
    %968 = vmatprep.subr.mxu0 0.0
    %969 = vmatpush1.msra.mxu0 0.0
    %970 = vmatprep.subr.mxu0 0.0
    %971 = vmatpush1.msra.mxu0 0.0
    %972 = vmatprep.subr.mxu0 0.0
    %973 = vmatpush1.msra.mxu0 0.0
    %974 = vmatprep.subr.mxu0 0.0
    %975 = vmatpush1.msra.mxu0 0.0
    %976 = vmatprep.subr.mxu0 0.0
    %977 = vmatpush1.msra.mxu0 0.0
    %978 = vmatprep.subr.mxu0 0.0
    %979 = vmatpush1.msra.mxu0 0.0
    %980 = vmatprep.subr.mxu0 0.0
    %981 = vmatpush1.msra.mxu0 0.0
    %982 = vmatprep.subr.mxu0 0.0
    %983 = vmatpush1.msra.mxu0 0.0
    %984 = vmatprep.subr.mxu0 0.0
    %985 = vmatpush1.msra.mxu0 0.0
    %986 = vmatprep.subr.mxu0 0.0
    %987 = vmatpush1.msra.mxu0 0.0
    %988 = vmatprep.subr.mxu0 0.0
    %989 = vmatpush1.msra.mxu0 0.0
    %990 = vmatprep.subr.mxu0 0.0
    %991 = vmatpush1.msra.mxu0 0.0
    %992 = vmatprep.subr.mxu0 0.0
    %993 = vmatpush1.msra.mxu0 0.0
    %994 = vmatprep.subr.mxu0 0.0
    %995 = vmatpush1.msra.mxu0 0.0
    %996 = vmatprep.subr.mxu0 0.0
    %997 = vmatpush1.msra.mxu0 0.0
    %998 = vmatprep.subr.mxu0 0.0
    %999 = vmatpush1.msra.mxu0 0.0
    %1000 = vmatprep.subr.mxu0 0.0
    %1001 = vmatpush1.msra.mxu0 0.0
    %1002 = vmatprep.subr.mxu0 0.0
    %1003 = vmatpush1.msra.mxu0 0.0
    %1004 = vmatprep.subr.mxu0 0.0
    %1005 = vmatpush1.msra.mxu0 0.0
    %1006 = vmatprep.subr.mxu0 0.0
    %1007 = vmatpush1.msra.mxu0 0.0
    %1008 = vmatprep.subr.mxu0 0.0
    %1009 = vmatpush1.msra.mxu0 0.0
    %1010 = vmatprep.subr.mxu0 0.0
    %1011 = vmatpush1.msra.mxu0 0.0
    %1012 = vmatprep.mubr.f32.mxu0 0.0
    %1013 = vmatmul.mubr.f32.gmra.mrb[0].mxu0 %v875
    %v1014 = vpop.f32.mrb[0].mxu0
    %v1015 = vadd.f32 0.0, %v1014
    %v1016 = vpop.f32.mrb[0].mxu0
    %v1017 = vadd.f32 0.0, %v1016
    %1018 = vdwg.mxu0
    %v1019 = vld [vmem:[%s8] sm:$0xff]
    %v1024 = vcombine.low %v944, %v946
    %v1025 = vcombine.low %v1015, %v1017
    %v1027 = vunpack.c.l.s4 1983009808
    %v1028 = vunpack.c.0.s8 %v1027
    %v1029 = vlaneseq
    %v1030 = vshrl.u32 %v1029, 7
    %v1031 = vsub.s32 %v1028, %v1030
    %v1032 = vrot.slane %v1024, %v1031
    %v1034 = vunpack.c.l.s4 1983009808
    %v1035 = vunpack.c.0.s8 %v1034
    %v1036 = vlaneseq
    %v1037 = vshrl.u32 %v1036, 7
    %v1038 = vsub.s32 %v1035, %v1037
    %v1039 = vrot.slane %v1025, %v1038
    %v1040 = vcombine.low %v1032, %v1039
    %v1042 = vadd.f32 %v1019, %v1040
    %1043 = vst [vmem:[#allocation10] sm:$0xff] %v1042
    // Predicated region
    $region54: #{tpu_custom_call.1} parent=1 // pred_check
      _
    $region55: #{tpu_custom_call.1} parent=1 // pred_check_branch
      %1045 = sbr.rel (0) target = $region57
    $region56: #{tpu_custom_call.1} parent=1 // pred_region
      %s1047 = ssub.s32 128, 128
      %1048 = vsyncadd [#allocation4], %s1047
      %s1050 = sshll.u32 [#allocation10], 4
      %s1051 = int_to_ptr.vmem [resolvable:$true] %s1050
      %1053 = dma.vmem_to_hbm [thread:$0]  %s1051, 128, %s9, [#allocation4]
    $region57: #{tpu_custom_call.1} parent=1 // pred_fallthru
      _
    // Predicated region
    $region58: #{tpu_custom_call.1} parent=1 // pred_check
      _
    $region59: #{tpu_custom_call.1} parent=1 // pred_check_branch
      %1055 = sbr.rel (0) target = $region61
    $region60: #{tpu_custom_call.1} parent=1 // pred_region
      %1056 = dma.done [#allocation4], 128
    $region61: #{tpu_custom_call.1} parent=1 // pred_fallthru
      _
    %1057 = vsyncpa [#allocation3], 1
    %1058 = vsyncpa [#allocation6], 1
    %1059 = vsyncpa [#allocation9], 1
    %1060 = vsyncpa [#allocation4], 1

</llo_original>
